<compile_context>
chip_gen: v7x
topology: tpu7x:2x2x1
jax: 0.10.0
libtpu: 0.0.40
codegen_flags: <defaults>
</compile_context>

<pallas_src>
import functools

import jax
import jax.numpy as jnp
from jax.experimental import pallas as pl
from jax.experimental.pallas import tpu as pltpu


def _rel_link_kernel(src_ref, dst_ref, psb_ref, pd_ref, out_ref):
    """score_tile = relu(onehot(src) @ P_sb + onehot(dst) @ P_d)."""
    te = out_ref.shape[0]
    n = psb_ref.shape[0]
    # One-hot row selectors built on the VPU; gather runs on the MXU (K = N).
    iota = jax.lax.broadcasted_iota(jnp.int32, (te, n), 1)
    onehot_s = (iota == src_ref[...]).astype(psb_ref.dtype)   # [TE, N]
    onehot_d = (iota == dst_ref[...]).astype(pd_ref.dtype)    # [TE, N]
    acc = jnp.dot(onehot_s, psb_ref[...], preferred_element_type=jnp.float32)
    acc = acc + jnp.dot(onehot_d, pd_ref[...], preferred_element_type=jnp.float32)
    out_ref[...] = jnp.maximum(acc, 0.0).astype(out_ref.dtype)


def _round_up(x, m):
    return (x + m - 1) // m * m


@functools.partial(jax.jit, static_argnames=("tile_edges", "out_dtype"))
def rel_link_predictor(h, src, dst, weight, bias, *, tile_edges=1024,
                       out_dtype=jnp.float32):
    """Forward pass of RelLinkPredictor.

    h      : [N, in_feat]              node features
    src    : [E] int                   edge source node indices
    dst    : [E] int                   edge destination node indices
    weight : [num_classes, 2*in_feat]  nn.Linear weight
    bias   : [num_classes]             nn.Linear bias
    returns: [E, num_classes] edge scores (f32 by default; bf16 is the fast
             path if the consumer tolerates it — accumulation stays f32).
    """
    E = src.shape[0]
    N, in_feat = h.shape
    num_classes = weight.shape[0]

    if E == 0:
        return jnp.zeros((0, num_classes), out_dtype)

    # --- per-node projections (tiny [N, C] matmuls, done once in XLA) -----
    # TODO(synk): for very large N, P_s/P_d ([N, C] each) stop fitting in
    # VMEM and the one-hot K=N matmul stops being free; switch to a DMA
    # row-gather of h + in-kernel x @ W^T in that regime.
    hf = h.astype(jnp.float32)
    wf = weight.astype(jnp.float32)
    bf = bias.astype(jnp.float32)
    p_sb = jnp.dot(hf, wf[:, :in_feat].T,
                   precision=jax.lax.Precision.HIGHEST) + bf[None, :]  # [N, C]
    p_d = jnp.dot(hf, wf[:, in_feat:].T,
                  precision=jax.lax.Precision.HIGHEST)                 # [N, C]

    # --- tiling: multiple of 8 sublanes; keep >= 4 grid steps for v7x -----
    TE = min(tile_edges, _round_up(max(-(-E // 4), 8), 8))
    E_pad = _round_up(E, TE)

    src2 = src.astype(jnp.int32).reshape(E, 1)
    dst2 = dst.astype(jnp.int32).reshape(E, 1)
    if E_pad != E:
        pad = ((0, E_pad - E), (0, 0))
        src2 = jnp.pad(src2, pad)   # padded rows read node 0, trimmed below
        dst2 = jnp.pad(dst2, pad)

    grid = (E_pad // TE,)
    out_bytes = jnp.dtype(out_dtype).itemsize
    cost = pl.CostEstimate(
        flops=4 * E_pad * N * num_classes,        # two [TE,N]x[N,C] matmuls
        transcendentals=0,
        bytes_accessed=(2 * E_pad * 4                        # src + dst
                        + 2 * N * num_classes * 4            # P_sb + P_d
                        + E_pad * num_classes * out_bytes))  # output

    out = pl.pallas_call(
        _rel_link_kernel,
        out_shape=jax.ShapeDtypeStruct((E_pad, num_classes), out_dtype),
        grid_spec=pltpu.PrefetchScalarGridSpec(
            num_scalar_prefetch=0,
            grid=grid,
            in_specs=[
                # per-edge indices: tiled along edges
                pl.BlockSpec((TE, 1), lambda i: (i, 0)),
                pl.BlockSpec((TE, 1), lambda i: (i, 0)),
                # per-node projections: grid-invariant (constant index_map
                # -> VMEM-resident, no per-step re-DMA)
                pl.BlockSpec((N, num_classes), lambda i: (0, 0)),
                pl.BlockSpec((N, num_classes), lambda i: (0, 0)),
            ],
            out_specs=pl.BlockSpec((TE, num_classes), lambda i: (i, 0)),
        ),
        compiler_params=pltpu.CompilerParams(
            dimension_semantics=("parallel",)),
        cost_estimate=cost,
    )(src2, dst2, p_sb, p_d)

    if E_pad != E:
        out = out[:E]              # only row padding ever needs trimming
    return out


def _reference(h, src, dst, weight, bias):
    xx = jnp.concatenate([h[src], h[dst]], axis=-1)
    return jax.nn.relu(
        jnp.dot(xx, weight.T, precision=jax.lax.Precision.HIGHEST) + bias)


if __name__ == "__main__":
    key = jax.random.PRNGKey(0)
    k_h, k_w, k_b, k_s, k_d = jax.random.split(key, 5)

    N = 64            # number of nodes
    E = 2048          # number of edges (all canonical etypes flattened)
    in_feat = 32
    num_classes = 237

    h = jax.random.normal(k_h, (N, in_feat), dtype=jnp.float32)
    # deterministic nn.Linear-style init
    bound = 1.0 / jnp.sqrt(2.0 * in_feat)
    weight = jax.random.uniform(k_w, (num_classes, 2 * in_feat),
                                minval=-bound, maxval=bound, dtype=jnp.float32)
    bias = jax.random.uniform(k_b, (num_classes,),
                              minval=-bound, maxval=bound, dtype=jnp.float32)
    src = jax.random.randint(k_s, (E,), 0, N, dtype=jnp.int32)
    dst = jax.random.randint(k_d, (E,), 0, N, dtype=jnp.int32)

    score = rel_link_predictor(h, src, dst, weight, bias)
    score = jax.block_until_ready(score)

    ref = _reference(h, src, dst, weight, bias)
    assert score.shape == (E, num_classes)
    assert jnp.allclose(score, ref, atol=1e-5, rtol=1e-5)

    print("KERNEL_OK")
</pallas_src>

<mosaic_0001>
module attributes {stable_mosaic.version = 11 : i64} {
  func.func @_rel_link_kernel(%arg0: i32, %arg1: memref<512x1xi32, #tpu.memory_space<vmem>>, %arg2: memref<512x1xi32, #tpu.memory_space<vmem>>, %arg3: memref<64x237xf32, #tpu.memory_space<vmem>>, %arg4: memref<64x237xf32, #tpu.memory_space<vmem>>, %arg5: memref<512x237xf32, #tpu.memory_space<vmem>>) attributes {dimension_semantics = [#tpu.dimension_semantics<parallel>], iteration_bounds = array<i64: 4>, scalar_prefetch = 0 : i64, scratch_operands = 0 : i64, tpu.core_type = #tpu.core_type<tc>, window_params = [{transform_indices = @transform_0, window_bounds = array<i64: 512, 1>}, {transform_indices = @transform_1, window_bounds = array<i64: 512, 1>}, {pipeline_mode = #tpu.pipeline_mode<synchronous>, transform_indices = @transform_2, window_bounds = array<i64: 64, 237>}, {pipeline_mode = #tpu.pipeline_mode<synchronous>, transform_indices = @transform_3, window_bounds = array<i64: 64, 237>}, {transform_indices = @transform_4, window_bounds = array<i64: 512, 237>}]} {
    %0 = tpu.iota {dimensions = array<i32: 1>} : vector<512x64xi32>
    %c0 = arith.constant 0 : index
    %c0_0 = arith.constant 0 : index
    %1 = vector.load %arg1[%c0, %c0_0] : memref<512x1xi32, #tpu.memory_space<vmem>>, vector<512x1xi32>
    %2 = vector.broadcast %1 : vector<512x1xi32> to vector<512x64xi32>
    %3 = arith.cmpi eq, %0, %2 : vector<512x64xi32>
    %4 = arith.extui %3 : vector<512x64xi1> to vector<512x64xi32>
    %5 = arith.sitofp %4 : vector<512x64xi32> to vector<512x64xf32>
    %c0_1 = arith.constant 0 : index
    %c0_2 = arith.constant 0 : index
    %6 = vector.load %arg2[%c0_1, %c0_2] : memref<512x1xi32, #tpu.memory_space<vmem>>, vector<512x1xi32>
    %7 = vector.broadcast %6 : vector<512x1xi32> to vector<512x64xi32>
    %8 = arith.cmpi eq, %0, %7 : vector<512x64xi32>
    %9 = arith.extui %8 : vector<512x64xi1> to vector<512x64xi32>
    %10 = arith.sitofp %9 : vector<512x64xi32> to vector<512x64xf32>
    %c0_3 = arith.constant 0 : index
    %c0_4 = arith.constant 0 : index
    %11 = vector.load %arg3[%c0_3, %c0_4] : memref<64x237xf32, #tpu.memory_space<vmem>>, vector<64x237xf32>
    %cst = arith.constant dense<0.000000e+00> : vector<512x237xf32>
    %12 = tpu.matmul %5, %11, %cst {dimension_numbers = #tpu.dot_dimension_numbers<[1], [0], [0], [1], [0, 0, 1, 1], [], []>} : vector<512x64xf32>, vector<64x237xf32>, vector<512x237xf32> -> vector<512x237xf32>
    %c0_5 = arith.constant 0 : index
    %c0_6 = arith.constant 0 : index
    %13 = vector.load %arg4[%c0_5, %c0_6] : memref<64x237xf32, #tpu.memory_space<vmem>>, vector<64x237xf32>
    %cst_7 = arith.constant dense<0.000000e+00> : vector<512x237xf32>
    %14 = tpu.matmul %10, %13, %cst_7 {dimension_numbers = #tpu.dot_dimension_numbers<[1], [0], [0], [1], [0, 0, 1, 1], [], []>} : vector<512x64xf32>, vector<64x237xf32>, vector<512x237xf32> -> vector<512x237xf32>
    %15 = arith.addf %12, %14 : vector<512x237xf32>
    %cst_8 = arith.constant 0.000000e+00 : f32
    %16 = vector.broadcast %cst_8 : f32 to vector<512x237xf32>
    %17 = arith.maximumf %15, %16 : vector<512x237xf32>
    %c0_9 = arith.constant 0 : index
    %c0_10 = arith.constant 0 : index
    %18 = vector.load %arg5[%c0_9, %c0_10] : memref<512x237xf32, #tpu.memory_space<vmem>>, vector<512x237xf32>
    tpu.vector_store %arg5[%c0_9, %c0_10], %17 {strides = array<i32>} : memref<512x237xf32, #tpu.memory_space<vmem>>, vector<512x237xf32>,
    return
  }
  func.func @transform_0(%arg0: i32) -> (i32, i32) {
    %c0_i32 = arith.constant 0 : i32
    %c0_i32_0 = arith.constant 0 : i32
    return %arg0, %c0_i32 : i32, i32
  }
  func.func @transform_1(%arg0: i32) -> (i32, i32) {
    %c0_i32 = arith.constant 0 : i32
    %c0_i32_0 = arith.constant 0 : i32
    return %arg0, %c0_i32 : i32, i32
  }
  func.func @transform_2(%arg0: i32) -> (i32, i32) {
    %c0_i32 = arith.constant 0 : i32
    %c0_i32_0 = arith.constant 0 : i32
    %c0_i32_1 = arith.constant 0 : i32
    return %c0_i32, %c0_i32_0 : i32, i32
  }
  func.func @transform_3(%arg0: i32) -> (i32, i32) {
    %c0_i32 = arith.constant 0 : i32
    %c0_i32_0 = arith.constant 0 : i32
    %c0_i32_1 = arith.constant 0 : i32
    return %c0_i32, %c0_i32_0 : i32, i32
  }
  func.func @transform_4(%arg0: i32) -> (i32, i32) {
    %c0_i32 = arith.constant 0 : i32
    %c0_i32_0 = arith.constant 0 : i32
    return %arg0, %c0_i32 : i32, i32
  }
}

</mosaic_0001>

<llo_original>
// kernel: rel_link_predictor.1
$region0: #{rel_link_predictor.1}
  #allocation0 [shape = 'u32[]', space=smem, size = 0x4, offset = 0x4, fixed_abs, tag = 'smem constant byte address 0x4 - core index']
  #allocation1 [shape = 'u32[144,128]{1,0:T(1,128)}', space=vmem, size = 0x12000, scoped, tag = 'internal scratch']
  %s0 = inlined_call_operand.vmem [shape: s32[2048,1], index: 0, kind: input, shape index: {}]
  %s1 = inlined_call_operand.vmem [shape: s32[2048,1], index: 1, kind: input, shape index: {}]
  %s2 = inlined_call_operand.vmem [shape: f32[64,237], index: 2, kind: input, shape index: {}]
  %s3 = inlined_call_operand.vmem [shape: f32[64,237], index: 3, kind: input, shape index: {}]
  %s4 = inlined_call_operand.vmem [shape: f32[2048,237], index: 4, kind: output, shape index: {}]
  %s5 = sld [smem:[#allocation0]]
  $region49: #{rel_link_predictor.1} parent=0
    _
  %s7 = ssub.s32 1, %s5
  %s8 = scalar_select 0, %s7, %s5
  loop: start=0, step=1, limit=6
  $region2: #{rel_link_predictor.1} parent=0 // loop_pre_header
    _
  $region3: #{rel_link_predictor.1} parent=0 // loop_header
    %s10 = sphi 0, %s14
    %p11 = scmp.ge.s32.totalorder %s10, 6
    %s20 = sphi 0, %s22
    %s23 = sphi 0, %s20
    %s24 = sphi 0, %s23
    %s40 = sphi 0, %s24
    %s46 = sphi 0, %s48
    %s49 = sphi 0, %s46
    %s50 = sphi 0, %s49
    %s66 = sphi 0, %s50
    %s70 = sphi 0, %s70
    %s72 = sphi 0, %s70
    %s73 = sphi 0, %s72
    %s87 = sphi 0, %s73
    %s91 = sphi 0, %s91
    %s93 = sphi 0, %s91
    %s94 = sphi 0, %s93
    %s108 = sphi 0, %s94
    %s114 = sphi 0, %s116
    %s117 = sphi 0, %s114
    %s118 = sphi 0, %s117
    %s134 = sphi 0, %s118
  $region4: #{rel_link_predictor.1} parent=0 // loop_header_branch
    %13 = sbr.rel (%p11) target = $region8
  $region5: #{rel_link_predictor.1} parent=0 // loop_body
    %s15 = ssub.s32 %s10, 1
    %s16 = ssub.s32 %s10, 2
    %s17 = sadd.s32 %s10, 1
    %s18 = ssub.s32 %s10, %s17
    %p19 = scmp.eq.s32.totalorder %s18, 0
    %s21 = sadd.s32 %s20, 1
    %s22 = scalar_select %p19, %s20, %s21
    %p25 = pneg %p19
    %p26 = scmp.eq.s32.totalorder %s10, 3
    %p27 = por %p25, %p26
    %p28 = scmp.ne.s32.totalorder %s20, %s23
    %p29 = scmp.eq.s32.totalorder %s10, 0
    %p30 = por %p28, %p29
    %p31 = scmp.ne.s32.totalorder %s20, %s23
    %p32 = scmp.eq.s32.totalorder %s15, 3
    %p33 = por %p31, %p32
    %p34 = scmp.ne.s32.totalorder %s23, %s24
    %p35 = scmp.eq.s32.totalorder %s15, 0
    %p36 = por %p34, %p35
    %p37 = scmp.ne.s32.totalorder %s23, %s24
    %p38 = scmp.eq.s32.totalorder %s16, 3
    %p39 = por %p37, %p38
    %p41 = scmp.ne.s32.totalorder %s24, %s40
    %p42 = scmp.eq.s32.totalorder %s16, 0
    %p43 = por %p41, %p42
    %s44 = ssub.s32 %s10, %s17
    %p45 = scmp.eq.s32.totalorder %s44, 0
    %s47 = sadd.s32 %s46, 1
    %s48 = scalar_select %p45, %s46, %s47
    %p51 = pneg %p45
    %p52 = scmp.eq.s32.totalorder %s10, 3
    %p53 = por %p51, %p52
    %p54 = scmp.ne.s32.totalorder %s46, %s49
    %p55 = scmp.eq.s32.totalorder %s10, 0
    %p56 = por %p54, %p55
    %p57 = scmp.ne.s32.totalorder %s46, %s49
    %p58 = scmp.eq.s32.totalorder %s15, 3
    %p59 = por %p57, %p58
    %p60 = scmp.ne.s32.totalorder %s49, %s50
    %p61 = scmp.eq.s32.totalorder %s15, 0
    %p62 = por %p60, %p61
    %p63 = scmp.ne.s32.totalorder %s49, %s50
    %p64 = scmp.eq.s32.totalorder %s16, 3
    %p65 = por %p63, %p64
    %p67 = scmp.ne.s32.totalorder %s50, %s66
    %p68 = scmp.eq.s32.totalorder %s16, 0
    %p69 = por %p67, %p68
    %s71 = sadd.s32 %s70, 1
    %p74 = scmp.eq.s32.totalorder %s10, 3
    %p75 = scmp.ne.s32.totalorder %s70, %s72
    %p76 = scmp.eq.s32.totalorder %s10, 0
    %p77 = por %p75, %p76
    %p78 = scmp.ne.s32.totalorder %s70, %s72
    %p79 = scmp.eq.s32.totalorder %s15, 3
    %p80 = por %p78, %p79
    %p81 = scmp.ne.s32.totalorder %s72, %s73
    %p82 = scmp.eq.s32.totalorder %s15, 0
    %p83 = por %p81, %p82
    %p84 = scmp.ne.s32.totalorder %s72, %s73
    %p85 = scmp.eq.s32.totalorder %s16, 3
    %p86 = por %p84, %p85
    %p88 = scmp.ne.s32.totalorder %s73, %s87
    %p89 = scmp.eq.s32.totalorder %s16, 0
    %p90 = por %p88, %p89
    %s92 = sadd.s32 %s91, 1
    %p95 = scmp.eq.s32.totalorder %s10, 3
    %p96 = scmp.ne.s32.totalorder %s91, %s93
    %p97 = scmp.eq.s32.totalorder %s10, 0
    %p98 = por %p96, %p97
    %p99 = scmp.ne.s32.totalorder %s91, %s93
    %p100 = scmp.eq.s32.totalorder %s15, 3
    %p101 = por %p99, %p100
    %p102 = scmp.ne.s32.totalorder %s93, %s94
    %p103 = scmp.eq.s32.totalorder %s15, 0
    %p104 = por %p102, %p103
    %p105 = scmp.ne.s32.totalorder %s93, %s94
    %p106 = scmp.eq.s32.totalorder %s16, 3
    %p107 = por %p105, %p106
    %p109 = scmp.ne.s32.totalorder %s94, %s108
    %p110 = scmp.eq.s32.totalorder %s16, 0
    %p111 = por %p109, %p110
    %s112 = ssub.s32 %s10, %s17
    %p113 = scmp.eq.s32.totalorder %s112, 0
    %s115 = sadd.s32 %s114, 1
    %s116 = scalar_select %p113, %s114, %s115
    %p119 = pneg %p113
    %p120 = scmp.eq.s32.totalorder %s10, 3
    %p121 = por %p119, %p120
    %p122 = scmp.ne.s32.totalorder %s114, %s117
    %p123 = scmp.eq.s32.totalorder %s10, 0
    %p124 = por %p122, %p123
    %p125 = scmp.ne.s32.totalorder %s114, %s117
    %p126 = scmp.eq.s32.totalorder %s15, 3
    %p127 = por %p125, %p126
    %p128 = scmp.ne.s32.totalorder %s117, %s118
    %p129 = scmp.eq.s32.totalorder %s15, 0
    %p130 = por %p128, %p129
    %p131 = scmp.ne.s32.totalorder %s117, %s118
    %p132 = scmp.eq.s32.totalorder %s16, 3
    %p133 = por %p131, %p132
    %p135 = scmp.ne.s32.totalorder %s118, %s134
    %p136 = scmp.eq.s32.totalorder %s16, 0
    %p137 = por %p135, %p136
    %p138 = scmp.le.s32.totalorder 1, %s10
    %p139 = scmp.lt.s32.totalorder %s10, 5
    %p140 = pnand %p138, %p139
    %p141 = pneg %p140
    // Predicated region
    $region9: #{rel_link_predictor.1} parent=5 // pred_check
      _
    $region10: #{rel_link_predictor.1} parent=5 // pred_check_branch
      %143 = sbr.rel (%p140) target = $region12
    $region11: #{rel_link_predictor.1} parent=5 // pred_region
      %s144 = ssub.s32 %s10, 1
      // Predicated region
      $region13: #{rel_link_predictor.1} parent=11 // pred_check
        %p145 = pneg %p83
      $region14: #{rel_link_predictor.1} parent=11 // pred_check_branch
        %147 = sbr.rel (%p145) target = $region16
      $region15: #{rel_link_predictor.1} parent=11 // pred_region
        _
      $region16: #{rel_link_predictor.1} parent=11 // pred_fallthru
        _
      // Predicated region
      $region17: #{rel_link_predictor.1} parent=11 // pred_check
        %p148 = pneg %p104
      $region18: #{rel_link_predictor.1} parent=11 // pred_check_branch
        %150 = sbr.rel (%p148) target = $region20
      $region19: #{rel_link_predictor.1} parent=11 // pred_region
        _
      $region20: #{rel_link_predictor.1} parent=11 // pred_fallthru
        _
    $region12: #{rel_link_predictor.1} parent=5 // pred_fallthru
      _
    %p151 = scmp.lt.s32.totalorder %s10, 4
    // Predicated region
    $region21: #{rel_link_predictor.1} parent=5 // pred_check
      %p152 = pneg %p151
    $region22: #{rel_link_predictor.1} parent=5 // pred_check_branch
      %154 = sbr.rel (%p152) target = $region24
    $region23: #{rel_link_predictor.1} parent=5 // pred_region
      // Predicated region
      $region25: #{rel_link_predictor.1} parent=23 // pred_check
        %p155 = pneg %p30
      $region26: #{rel_link_predictor.1} parent=23 // pred_check_branch
        %157 = sbr.rel (%p155) target = $region28
      $region27: #{rel_link_predictor.1} parent=23 // pred_region
        %s158 = smul.u32 64, %s10
        %p159 = scmp.lt.s32.totalorder %s158, 255
        %s160 = scalar_select %p159, %s158, 255
        %s161 = smul.addr %s160, 8
        %s162 = scalar_lea.vmem %s0, %s161
        %s163 = smul.u32 64, %s10
      $region28: #{rel_link_predictor.1} parent=23 // pred_fallthru
        _
      // Predicated region
      $region29: #{rel_link_predictor.1} parent=23 // pred_check
        %p164 = pneg %p56
      $region30: #{rel_link_predictor.1} parent=23 // pred_check_branch
        %166 = sbr.rel (%p164) target = $region32
      $region31: #{rel_link_predictor.1} parent=23 // pred_region
        %s167 = smul.u32 64, %s10
        %p168 = scmp.lt.s32.totalorder %s167, 255
        %s169 = scalar_select %p168, %s167, 255
        %s170 = smul.addr %s169, 8
        %s171 = scalar_lea.vmem %s1, %s170
        %s172 = smul.u32 64, %s10
      $region32: #{rel_link_predictor.1} parent=23 // pred_fallthru
        _
    $region24: #{rel_link_predictor.1} parent=5 // pred_fallthru
      _
    %p173 = scmp.le.s32.totalorder 1, %s10
    %p174 = scmp.lt.s32.totalorder %s10, 5
    %p175 = pnand %p173, %p174
    %p176 = pneg %p175
    // Predicated region
    $region33: #{rel_link_predictor.1} parent=5 // pred_check
      _
    $region34: #{rel_link_predictor.1} parent=5 // pred_check_branch
      %178 = sbr.rel (%p175) target = $region36
    $region35: #{rel_link_predictor.1} parent=5 // pred_region
      %s179 = ssub.s32 %s10, 1
      %s180 = smul.u32 64, %s15
      %p181 = scmp.lt.s32.totalorder %s180, 255
      %s182 = scalar_select %p181, %s180, 255
      %s183 = smul.addr %s182, 8
      %s184 = scalar_lea.vmem %s0, %s183
      %p185 = pneg %p36
      %p186 = pneg %p33
      %s187 = smul.u32 64, %s15
      %p188 = scmp.lt.s32.totalorder %s187, 255
      %s189 = scalar_select %p188, %s187, 255
      %s190 = smul.addr %s189, 8
      %s191 = scalar_lea.vmem %s1, %s190
      %p192 = pneg %p62
      %p193 = pneg %p59
      %p194 = pneg %p83
      %p195 = pneg %p80
      %p196 = pneg %p104
      %p197 = pneg %p101
      %p198 = pneg %p130
      %p199 = pneg %p127
      %s200 = smul.u32 64, %s15
      %p201 = scmp.lt.s32.totalorder %s200, 255
      %s202 = scalar_select %p201, %s200, 255
      %s203 = smul.addr %s202, 2
      %s204 = smul.addr %s203, 8
      %s205 = scalar_lea.vmem %s4, %s204
      %s206 = smul.u32 64, %s15
      %p207 = scmp.lt.s32.totalorder %s206, 255
      %s208 = scalar_select %p207, %s206, 255
      %s209 = smul.addr %s208, 8
      %s210 = scalar_lea.vmem %s0, %s209
      %s211 = smul.u32 64, %s15
      %s212 = smul.u32 64, %s15
      %p213 = scmp.lt.s32.totalorder %s212, 255
      %s214 = scalar_select %p213, %s212, 255
      %s215 = smul.addr %s214, 8
      %s216 = scalar_lea.vmem %s1, %s215
      %s217 = smul.u32 64, %s15
      %s218 = smul.u32 64, %s15
      %p219 = scmp.lt.s32.totalorder %s218, 255
      %s220 = scalar_select %p219, %s218, 255
      %s221 = smul.addr %s220, 2
      %s222 = smul.addr %s221, 8
      %s223 = scalar_lea.vmem %s4, %s222
      %s224 = smul.u32 64, %s15
      %v225 = vlaneseq
      %v226 = vand.u32 %v225, 127
      %v227 = vld [vmem:[%s210] sm:$0xff]
      %v228 = vld [vmem:[%s210 + $0x8] sm:$0xff]
      %v229 = vld [vmem:[%s210 + $0x10] sm:$0xff]
      %v230 = vld [vmem:[%s210 + $0x18] sm:$0xff]
      %v231 = vld [vmem:[%s210 + $0x20] sm:$0xff]
      %v232 = vld [vmem:[%s210 + $0x28] sm:$0xff]
      %v233 = vld [vmem:[%s210 + $0x30] sm:$0xff]
      %v234 = vld [vmem:[%s210 + $0x38] sm:$0xff]
      %v235 = vld [vmem:[%s210 + $0x40] sm:$0xff]
      %v236 = vld [vmem:[%s210 + $0x48] sm:$0xff]
      %v237 = vld [vmem:[%s210 + $0x50] sm:$0xff]
      %v238 = vld [vmem:[%s210 + $0x58] sm:$0xff]
      %v239 = vld [vmem:[%s210 + $0x60] sm:$0xff]
      %v240 = vld [vmem:[%s210 + $0x68] sm:$0xff]
      %v241 = vld [vmem:[%s210 + $0x70] sm:$0xff]
      %v242 = vld [vmem:[%s210 + $0x78] sm:$0xff]
      %v243 = vld [vmem:[%s210 + $0x80] sm:$0xff]
      %v244 = vld [vmem:[%s210 + $0x88] sm:$0xff]
      %v245 = vld [vmem:[%s210 + $0x90] sm:$0xff]
      %v246 = vld [vmem:[%s210 + $0x98] sm:$0xff]
      %v247 = vld [vmem:[%s210 + $0xa0] sm:$0xff]
      %v248 = vld [vmem:[%s210 + $0xa8] sm:$0xff]
      %v249 = vld [vmem:[%s210 + $0xb0] sm:$0xff]
      %v250 = vld [vmem:[%s210 + $0xb8] sm:$0xff]
      %v251 = vld [vmem:[%s210 + $0xc0] sm:$0xff]
      %v252 = vld [vmem:[%s210 + $0xc8] sm:$0xff]
      %v253 = vld [vmem:[%s210 + $0xd0] sm:$0xff]
      %v254 = vld [vmem:[%s210 + $0xd8] sm:$0xff]
      %v255 = vld [vmem:[%s210 + $0xe0] sm:$0xff]
      %v256 = vld [vmem:[%s210 + $0xe8] sm:$0xff]
      %v257 = vld [vmem:[%s210 + $0xf0] sm:$0xff]
      %v258 = vld [vmem:[%s210 + $0xf8] sm:$0xff]
      %v259 = vld [vmem:[%s210 + $0x100] sm:$0xff]
      %v260 = vld [vmem:[%s210 + $0x108] sm:$0xff]
      %v261 = vld [vmem:[%s210 + $0x110] sm:$0xff]
      %v262 = vld [vmem:[%s210 + $0x118] sm:$0xff]
      %v263 = vld [vmem:[%s210 + $0x120] sm:$0xff]
      %v264 = vld [vmem:[%s210 + $0x128] sm:$0xff]
      %v265 = vld [vmem:[%s210 + $0x130] sm:$0xff]
      %v266 = vld [vmem:[%s210 + $0x138] sm:$0xff]
      %v267 = vld [vmem:[%s210 + $0x140] sm:$0xff]
      %v268 = vld [vmem:[%s210 + $0x148] sm:$0xff]
      %v269 = vld [vmem:[%s210 + $0x150] sm:$0xff]
      %v270 = vld [vmem:[%s210 + $0x158] sm:$0xff]
      %v271 = vld [vmem:[%s210 + $0x160] sm:$0xff]
      %v272 = vld [vmem:[%s210 + $0x168] sm:$0xff]
      %v273 = vld [vmem:[%s210 + $0x170] sm:$0xff]
      %v274 = vld [vmem:[%s210 + $0x178] sm:$0xff]
      %v275 = vld [vmem:[%s210 + $0x180] sm:$0xff]
      %v276 = vld [vmem:[%s210 + $0x188] sm:$0xff]
      %v277 = vld [vmem:[%s210 + $0x190] sm:$0xff]
      %v278 = vld [vmem:[%s210 + $0x198] sm:$0xff]
      %v279 = vld [vmem:[%s210 + $0x1a0] sm:$0xff]
      %v280 = vld [vmem:[%s210 + $0x1a8] sm:$0xff]
      %v281 = vld [vmem:[%s210 + $0x1b0] sm:$0xff]
      %v282 = vld [vmem:[%s210 + $0x1b8] sm:$0xff]
      %v283 = vld [vmem:[%s210 + $0x1c0] sm:$0xff]
      %v284 = vld [vmem:[%s210 + $0x1c8] sm:$0xff]
      %v285 = vld [vmem:[%s210 + $0x1d0] sm:$0xff]
      %v286 = vld [vmem:[%s210 + $0x1d8] sm:$0xff]
      %v287 = vld [vmem:[%s210 + $0x1e0] sm:$0xff]
      %v288 = vld [vmem:[%s210 + $0x1e8] sm:$0xff]
      %v289 = vld [vmem:[%s210 + $0x1f0] sm:$0xff]
      %v290 = vld [vmem:[%s210 + $0x1f8] sm:$0xff]
      %291 = vset.pattern.permute.xlu0 0
      %292 = vperm.xlu0 %291, %v227
      %v293 = vpop.permute.xlu0 %292
      %294 = vset.pattern.permute.xlu0 0
      %295 = vperm.xlu0 %294, %v228
      %v296 = vpop.permute.xlu0 %295
      %297 = vset.pattern.permute.xlu0 0
      %298 = vperm.xlu0 %297, %v229
      %v299 = vpop.permute.xlu0 %298
      %300 = vset.pattern.permute.xlu0 0
      %301 = vperm.xlu0 %300, %v230
      %v302 = vpop.permute.xlu0 %301
      %303 = vset.pattern.permute.xlu0 0
      %304 = vperm.xlu0 %303, %v231
      %v305 = vpop.permute.xlu0 %304
      %306 = vset.pattern.permute.xlu0 0
      %307 = vperm.xlu0 %306, %v232
      %v308 = vpop.permute.xlu0 %307
      %309 = vset.pattern.permute.xlu0 0
      %310 = vperm.xlu0 %309, %v233
      %v311 = vpop.permute.xlu0 %310
      %312 = vset.pattern.permute.xlu0 0
      %313 = vperm.xlu0 %312, %v234
      %v314 = vpop.permute.xlu0 %313
      %315 = vset.pattern.permute.xlu0 0
      %316 = vperm.xlu0 %315, %v235
      %v317 = vpop.permute.xlu0 %316
      %318 = vset.pattern.permute.xlu0 0
      %319 = vperm.xlu0 %318, %v236
      %v320 = vpop.permute.xlu0 %319
      %321 = vset.pattern.permute.xlu0 0
      %322 = vperm.xlu0 %321, %v237
      %v323 = vpop.permute.xlu0 %322
      %324 = vset.pattern.permute.xlu0 0
      %325 = vperm.xlu0 %324, %v238
      %v326 = vpop.permute.xlu0 %325
      %327 = vset.pattern.permute.xlu0 0
      %328 = vperm.xlu0 %327, %v239
      %v329 = vpop.permute.xlu0 %328
      %330 = vset.pattern.permute.xlu0 0
      %331 = vperm.xlu0 %330, %v240
      %v332 = vpop.permute.xlu0 %331
      %333 = vset.pattern.permute.xlu0 0
      %334 = vperm.xlu0 %333, %v241
      %v335 = vpop.permute.xlu0 %334
      %336 = vset.pattern.permute.xlu0 0
      %337 = vperm.xlu0 %336, %v242
      %v338 = vpop.permute.xlu0 %337
      %339 = vset.pattern.permute.xlu0 0
      %340 = vperm.xlu0 %339, %v243
      %v341 = vpop.permute.xlu0 %340
      %342 = vset.pattern.permute.xlu0 0
      %343 = vperm.xlu0 %342, %v244
      %v344 = vpop.permute.xlu0 %343
      %345 = vset.pattern.permute.xlu0 0
      %346 = vperm.xlu0 %345, %v245
      %v347 = vpop.permute.xlu0 %346
      %348 = vset.pattern.permute.xlu0 0
      %349 = vperm.xlu0 %348, %v246
      %v350 = vpop.permute.xlu0 %349
      %351 = vset.pattern.permute.xlu0 0
      %352 = vperm.xlu0 %351, %v247
      %v353 = vpop.permute.xlu0 %352
      %354 = vset.pattern.permute.xlu0 0
      %355 = vperm.xlu0 %354, %v248
      %v356 = vpop.permute.xlu0 %355
      %357 = vset.pattern.permute.xlu0 0
      %358 = vperm.xlu0 %357, %v249
      %v359 = vpop.permute.xlu0 %358
      %360 = vset.pattern.permute.xlu0 0
      %361 = vperm.xlu0 %360, %v250
      %v362 = vpop.permute.xlu0 %361
      %363 = vset.pattern.permute.xlu0 0
      %364 = vperm.xlu0 %363, %v251
      %v365 = vpop.permute.xlu0 %364
      %366 = vset.pattern.permute.xlu0 0
      %367 = vperm.xlu0 %366, %v252
      %v368 = vpop.permute.xlu0 %367
      %369 = vset.pattern.permute.xlu0 0
      %370 = vperm.xlu0 %369, %v253
      %v371 = vpop.permute.xlu0 %370
      %372 = vset.pattern.permute.xlu0 0
      %373 = vperm.xlu0 %372, %v254
      %v374 = vpop.permute.xlu0 %373
      %375 = vset.pattern.permute.xlu0 0
      %376 = vperm.xlu0 %375, %v255
      %v377 = vpop.permute.xlu0 %376
      %378 = vset.pattern.permute.xlu0 0
      %379 = vperm.xlu0 %378, %v256
      %v380 = vpop.permute.xlu0 %379
      %381 = vset.pattern.permute.xlu0 0
      %382 = vperm.xlu0 %381, %v257
      %v383 = vpop.permute.xlu0 %382
      %384 = vset.pattern.permute.xlu0 0
      %385 = vperm.xlu0 %384, %v258
      %v386 = vpop.permute.xlu0 %385
      %387 = vset.pattern.permute.xlu0 0
      %388 = vperm.xlu0 %387, %v259
      %v389 = vpop.permute.xlu0 %388
      %390 = vset.pattern.permute.xlu0 0
      %391 = vperm.xlu0 %390, %v260
      %v392 = vpop.permute.xlu0 %391
      %393 = vset.pattern.permute.xlu0 0
      %394 = vperm.xlu0 %393, %v261
      %v395 = vpop.permute.xlu0 %394
      %396 = vset.pattern.permute.xlu0 0
      %397 = vperm.xlu0 %396, %v262
      %v398 = vpop.permute.xlu0 %397
      %399 = vset.pattern.permute.xlu0 0
      %400 = vperm.xlu0 %399, %v263
      %v401 = vpop.permute.xlu0 %400
      %402 = vset.pattern.permute.xlu0 0
      %403 = vperm.xlu0 %402, %v264
      %v404 = vpop.permute.xlu0 %403
      %405 = vset.pattern.permute.xlu0 0
      %406 = vperm.xlu0 %405, %v265
      %v407 = vpop.permute.xlu0 %406
      %408 = vset.pattern.permute.xlu0 0
      %409 = vperm.xlu0 %408, %v266
      %v410 = vpop.permute.xlu0 %409
      %411 = vset.pattern.permute.xlu0 0
      %412 = vperm.xlu0 %411, %v267
      %v413 = vpop.permute.xlu0 %412
      %414 = vset.pattern.permute.xlu0 0
      %415 = vperm.xlu0 %414, %v268
      %v416 = vpop.permute.xlu0 %415
      %417 = vset.pattern.permute.xlu0 0
      %418 = vperm.xlu0 %417, %v269
      %v419 = vpop.permute.xlu0 %418
      %420 = vset.pattern.permute.xlu0 0
      %421 = vperm.xlu0 %420, %v270
      %v422 = vpop.permute.xlu0 %421
      %423 = vset.pattern.permute.xlu0 0
      %424 = vperm.xlu0 %423, %v271
      %v425 = vpop.permute.xlu0 %424
      %426 = vset.pattern.permute.xlu0 0
      %427 = vperm.xlu0 %426, %v272
      %v428 = vpop.permute.xlu0 %427
      %429 = vset.pattern.permute.xlu0 0
      %430 = vperm.xlu0 %429, %v273
      %v431 = vpop.permute.xlu0 %430
      %432 = vset.pattern.permute.xlu0 0
      %433 = vperm.xlu0 %432, %v274
      %v434 = vpop.permute.xlu0 %433
      %435 = vset.pattern.permute.xlu0 0
      %436 = vperm.xlu0 %435, %v275
      %v437 = vpop.permute.xlu0 %436
      %438 = vset.pattern.permute.xlu0 0
      %439 = vperm.xlu0 %438, %v276
      %v440 = vpop.permute.xlu0 %439
      %441 = vset.pattern.permute.xlu0 0
      %442 = vperm.xlu0 %441, %v277
      %v443 = vpop.permute.xlu0 %442
      %444 = vset.pattern.permute.xlu0 0
      %445 = vperm.xlu0 %444, %v278
      %v446 = vpop.permute.xlu0 %445
      %447 = vset.pattern.permute.xlu0 0
      %448 = vperm.xlu0 %447, %v279
      %v449 = vpop.permute.xlu0 %448
      %450 = vset.pattern.permute.xlu0 0
      %451 = vperm.xlu0 %450, %v280
      %v452 = vpop.permute.xlu0 %451
      %453 = vset.pattern.permute.xlu0 0
      %454 = vperm.xlu0 %453, %v281
      %v455 = vpop.permute.xlu0 %454
      %456 = vset.pattern.permute.xlu0 0
      %457 = vperm.xlu0 %456, %v282
      %v458 = vpop.permute.xlu0 %457
      %459 = vset.pattern.permute.xlu0 0
      %460 = vperm.xlu0 %459, %v283
      %v461 = vpop.permute.xlu0 %460
      %462 = vset.pattern.permute.xlu0 0
      %463 = vperm.xlu0 %462, %v284
      %v464 = vpop.permute.xlu0 %463
      %465 = vset.pattern.permute.xlu0 0
      %466 = vperm.xlu0 %465, %v285
      %v467 = vpop.permute.xlu0 %466
      %468 = vset.pattern.permute.xlu0 0
      %469 = vperm.xlu0 %468, %v286
      %v470 = vpop.permute.xlu0 %469
      %471 = vset.pattern.permute.xlu0 0
      %472 = vperm.xlu0 %471, %v287
      %v473 = vpop.permute.xlu0 %472
      %474 = vset.pattern.permute.xlu0 0
      %475 = vperm.xlu0 %474, %v288
      %v476 = vpop.permute.xlu0 %475
      %477 = vset.pattern.permute.xlu0 0
      %478 = vperm.xlu0 %477, %v289
      %v479 = vpop.permute.xlu0 %478
      %480 = vset.pattern.permute.xlu0 0
      %481 = vperm.xlu0 %480, %v290
      %v482 = vpop.permute.xlu0 %481
      %vm483 = vcmp.eq.s32.totalorder %v226, %v293
      %vm484 = vcmp.eq.s32.totalorder %v226, %v296
      %vm485 = vcmp.eq.s32.totalorder %v226, %v299
      %vm486 = vcmp.eq.s32.totalorder %v226, %v302
      %vm487 = vcmp.eq.s32.totalorder %v226, %v305
      %vm488 = vcmp.eq.s32.totalorder %v226, %v308
      %vm489 = vcmp.eq.s32.totalorder %v226, %v311
      %vm490 = vcmp.eq.s32.totalorder %v226, %v314
      %vm491 = vcmp.eq.s32.totalorder %v226, %v317
      %vm492 = vcmp.eq.s32.totalorder %v226, %v320
      %vm493 = vcmp.eq.s32.totalorder %v226, %v323
      %vm494 = vcmp.eq.s32.totalorder %v226, %v326
      %vm495 = vcmp.eq.s32.totalorder %v226, %v329
      %vm496 = vcmp.eq.s32.totalorder %v226, %v332
      %vm497 = vcmp.eq.s32.totalorder %v226, %v335
      %vm498 = vcmp.eq.s32.totalorder %v226, %v338
      %vm499 = vcmp.eq.s32.totalorder %v226, %v341
      %vm500 = vcmp.eq.s32.totalorder %v226, %v344
      %vm501 = vcmp.eq.s32.totalorder %v226, %v347
      %vm502 = vcmp.eq.s32.totalorder %v226, %v350
      %vm503 = vcmp.eq.s32.totalorder %v226, %v353
      %vm504 = vcmp.eq.s32.totalorder %v226, %v356
      %vm505 = vcmp.eq.s32.totalorder %v226, %v359
      %vm506 = vcmp.eq.s32.totalorder %v226, %v362
      %vm507 = vcmp.eq.s32.totalorder %v226, %v365
      %vm508 = vcmp.eq.s32.totalorder %v226, %v368
      %vm509 = vcmp.eq.s32.totalorder %v226, %v371
      %vm510 = vcmp.eq.s32.totalorder %v226, %v374
      %vm511 = vcmp.eq.s32.totalorder %v226, %v377
      %vm512 = vcmp.eq.s32.totalorder %v226, %v380
      %vm513 = vcmp.eq.s32.totalorder %v226, %v383
      %vm514 = vcmp.eq.s32.totalorder %v226, %v386
      %vm515 = vcmp.eq.s32.totalorder %v226, %v389
      %vm516 = vcmp.eq.s32.totalorder %v226, %v392
      %vm517 = vcmp.eq.s32.totalorder %v226, %v395
      %vm518 = vcmp.eq.s32.totalorder %v226, %v398
      %vm519 = vcmp.eq.s32.totalorder %v226, %v401
      %vm520 = vcmp.eq.s32.totalorder %v226, %v404
      %vm521 = vcmp.eq.s32.totalorder %v226, %v407
      %vm522 = vcmp.eq.s32.totalorder %v226, %v410
      %vm523 = vcmp.eq.s32.totalorder %v226, %v413
      %vm524 = vcmp.eq.s32.totalorder %v226, %v416
      %vm525 = vcmp.eq.s32.totalorder %v226, %v419
      %vm526 = vcmp.eq.s32.totalorder %v226, %v422
      %vm527 = vcmp.eq.s32.totalorder %v226, %v425
      %vm528 = vcmp.eq.s32.totalorder %v226, %v428
      %vm529 = vcmp.eq.s32.totalorder %v226, %v431
      %vm530 = vcmp.eq.s32.totalorder %v226, %v434
      %vm531 = vcmp.eq.s32.totalorder %v226, %v437
      %vm532 = vcmp.eq.s32.totalorder %v226, %v440
      %vm533 = vcmp.eq.s32.totalorder %v226, %v443
      %vm534 = vcmp.eq.s32.totalorder %v226, %v446
      %vm535 = vcmp.eq.s32.totalorder %v226, %v449
      %vm536 = vcmp.eq.s32.totalorder %v226, %v452
      %vm537 = vcmp.eq.s32.totalorder %v226, %v455
      %vm538 = vcmp.eq.s32.totalorder %v226, %v458
      %vm539 = vcmp.eq.s32.totalorder %v226, %v461
      %vm540 = vcmp.eq.s32.totalorder %v226, %v464
      %vm541 = vcmp.eq.s32.totalorder %v226, %v467
      %vm542 = vcmp.eq.s32.totalorder %v226, %v470
      %vm543 = vcmp.eq.s32.totalorder %v226, %v473
      %vm544 = vcmp.eq.s32.totalorder %v226, %v476
      %vm545 = vcmp.eq.s32.totalorder %v226, %v479
      %vm546 = vcmp.eq.s32.totalorder %v226, %v482
      %v547 = vsel %vm483, 1, 0
      %v548 = vsel %vm484, 1, 0
      %v549 = vsel %vm485, 1, 0
      %v550 = vsel %vm486, 1, 0
      %v551 = vsel %vm487, 1, 0
      %v552 = vsel %vm488, 1, 0
      %v553 = vsel %vm489, 1, 0
      %v554 = vsel %vm490, 1, 0
      %v555 = vsel %vm491, 1, 0
      %v556 = vsel %vm492, 1, 0
      %v557 = vsel %vm493, 1, 0
      %v558 = vsel %vm494, 1, 0
      %v559 = vsel %vm495, 1, 0
      %v560 = vsel %vm496, 1, 0
      %v561 = vsel %vm497, 1, 0
      %v562 = vsel %vm498, 1, 0
      %v563 = vsel %vm499, 1, 0
      %v564 = vsel %vm500, 1, 0
      %v565 = vsel %vm501, 1, 0
      %v566 = vsel %vm502, 1, 0
      %v567 = vsel %vm503, 1, 0
      %v568 = vsel %vm504, 1, 0
      %v569 = vsel %vm505, 1, 0
      %v570 = vsel %vm506, 1, 0
      %v571 = vsel %vm507, 1, 0
      %v572 = vsel %vm508, 1, 0
      %v573 = vsel %vm509, 1, 0
      %v574 = vsel %vm510, 1, 0
      %v575 = vsel %vm511, 1, 0
      %v576 = vsel %vm512, 1, 0
      %v577 = vsel %vm513, 1, 0
      %v578 = vsel %vm514, 1, 0
      %v579 = vsel %vm515, 1, 0
      %v580 = vsel %vm516, 1, 0
      %v581 = vsel %vm517, 1, 0
      %v582 = vsel %vm518, 1, 0
      %v583 = vsel %vm519, 1, 0
      %v584 = vsel %vm520, 1, 0
      %v585 = vsel %vm521, 1, 0
      %v586 = vsel %vm522, 1, 0
      %v587 = vsel %vm523, 1, 0
      %v588 = vsel %vm524, 1, 0
      %v589 = vsel %vm525, 1, 0
      %v590 = vsel %vm526, 1, 0
      %v591 = vsel %vm527, 1, 0
      %v592 = vsel %vm528, 1, 0
      %v593 = vsel %vm529, 1, 0
      %v594 = vsel %vm530, 1, 0
      %v595 = vsel %vm531, 1, 0
      %v596 = vsel %vm532, 1, 0
      %v597 = vsel %vm533, 1, 0
      %v598 = vsel %vm534, 1, 0
      %v599 = vsel %vm535, 1, 0
      %v600 = vsel %vm536, 1, 0
      %v601 = vsel %vm537, 1, 0
      %v602 = vsel %vm538, 1, 0
      %v603 = vsel %vm539, 1, 0
      %v604 = vsel %vm540, 1, 0
      %v605 = vsel %vm541, 1, 0
      %v606 = vsel %vm542, 1, 0
      %v607 = vsel %vm543, 1, 0
      %v608 = vsel %vm544, 1, 0
      %v609 = vsel %vm545, 1, 0
      %v610 = vsel %vm546, 1, 0
      %v611 = vcvt.s32.f32 %v547
      %v612 = vcvt.s32.f32 %v548
      %v613 = vcvt.s32.f32 %v549
      %v614 = vcvt.s32.f32 %v550
      %v615 = vcvt.s32.f32 %v551
      %v616 = vcvt.s32.f32 %v552
      %v617 = vcvt.s32.f32 %v553
      %v618 = vcvt.s32.f32 %v554
      %v619 = vcvt.s32.f32 %v555
      %v620 = vcvt.s32.f32 %v556
      %v621 = vcvt.s32.f32 %v557
      %v622 = vcvt.s32.f32 %v558
      %v623 = vcvt.s32.f32 %v559
      %v624 = vcvt.s32.f32 %v560
      %v625 = vcvt.s32.f32 %v561
      %v626 = vcvt.s32.f32 %v562
      %v627 = vcvt.s32.f32 %v563
      %v628 = vcvt.s32.f32 %v564
      %v629 = vcvt.s32.f32 %v565
      %v630 = vcvt.s32.f32 %v566
      %v631 = vcvt.s32.f32 %v567
      %v632 = vcvt.s32.f32 %v568
      %v633 = vcvt.s32.f32 %v569
      %v634 = vcvt.s32.f32 %v570
      %v635 = vcvt.s32.f32 %v571
      %v636 = vcvt.s32.f32 %v572
      %v637 = vcvt.s32.f32 %v573
      %v638 = vcvt.s32.f32 %v574
      %v639 = vcvt.s32.f32 %v575
      %v640 = vcvt.s32.f32 %v576
      %v641 = vcvt.s32.f32 %v577
      %v642 = vcvt.s32.f32 %v578
      %v643 = vcvt.s32.f32 %v579
      %v644 = vcvt.s32.f32 %v580
      %v645 = vcvt.s32.f32 %v581
      %v646 = vcvt.s32.f32 %v582
      %v647 = vcvt.s32.f32 %v583
      %v648 = vcvt.s32.f32 %v584
      %v649 = vcvt.s32.f32 %v585
      %v650 = vcvt.s32.f32 %v586
      %v651 = vcvt.s32.f32 %v587
      %v652 = vcvt.s32.f32 %v588
      %v653 = vcvt.s32.f32 %v589
      %v654 = vcvt.s32.f32 %v590
      %v655 = vcvt.s32.f32 %v591
      %v656 = vcvt.s32.f32 %v592
      %v657 = vcvt.s32.f32 %v593
      %v658 = vcvt.s32.f32 %v594
      %v659 = vcvt.s32.f32 %v595
      %v660 = vcvt.s32.f32 %v596
      %v661 = vcvt.s32.f32 %v597
      %v662 = vcvt.s32.f32 %v598
      %v663 = vcvt.s32.f32 %v599
      %v664 = vcvt.s32.f32 %v600
      %v665 = vcvt.s32.f32 %v601
      %v666 = vcvt.s32.f32 %v602
      %v667 = vcvt.s32.f32 %v603
      %v668 = vcvt.s32.f32 %v604
      %v669 = vcvt.s32.f32 %v605
      %v670 = vcvt.s32.f32 %v606
      %v671 = vcvt.s32.f32 %v607
      %v672 = vcvt.s32.f32 %v608
      %v673 = vcvt.s32.f32 %v609
      %v674 = vcvt.s32.f32 %v610
      %v675 = vld [vmem:[%s216] sm:$0xff]
      %v676 = vld [vmem:[%s216 + $0x8] sm:$0xff]
      %v677 = vld [vmem:[%s216 + $0x10] sm:$0xff]
      %v678 = vld [vmem:[%s216 + $0x18] sm:$0xff]
      %v679 = vld [vmem:[%s216 + $0x20] sm:$0xff]
      %v680 = vld [vmem:[%s216 + $0x28] sm:$0xff]
      %v681 = vld [vmem:[%s216 + $0x30] sm:$0xff]
      %v682 = vld [vmem:[%s216 + $0x38] sm:$0xff]
      %v683 = vld [vmem:[%s216 + $0x40] sm:$0xff]
      %v684 = vld [vmem:[%s216 + $0x48] sm:$0xff]
      %v685 = vld [vmem:[%s216 + $0x50] sm:$0xff]
      %v686 = vld [vmem:[%s216 + $0x58] sm:$0xff]
      %v687 = vld [vmem:[%s216 + $0x60] sm:$0xff]
      %v688 = vld [vmem:[%s216 + $0x68] sm:$0xff]
      %v689 = vld [vmem:[%s216 + $0x70] sm:$0xff]
      %v690 = vld [vmem:[%s216 + $0x78] sm:$0xff]
      %v691 = vld [vmem:[%s216 + $0x80] sm:$0xff]
      %v692 = vld [vmem:[%s216 + $0x88] sm:$0xff]
      %v693 = vld [vmem:[%s216 + $0x90] sm:$0xff]
      %v694 = vld [vmem:[%s216 + $0x98] sm:$0xff]
      %v695 = vld [vmem:[%s216 + $0xa0] sm:$0xff]
      %v696 = vld [vmem:[%s216 + $0xa8] sm:$0xff]
      %v697 = vld [vmem:[%s216 + $0xb0] sm:$0xff]
      %v698 = vld [vmem:[%s216 + $0xb8] sm:$0xff]
      %v699 = vld [vmem:[%s216 + $0xc0] sm:$0xff]
      %v700 = vld [vmem:[%s216 + $0xc8] sm:$0xff]
      %v701 = vld [vmem:[%s216 + $0xd0] sm:$0xff]
      %v702 = vld [vmem:[%s216 + $0xd8] sm:$0xff]
      %v703 = vld [vmem:[%s216 + $0xe0] sm:$0xff]
      %v704 = vld [vmem:[%s216 + $0xe8] sm:$0xff]
      %v705 = vld [vmem:[%s216 + $0xf0] sm:$0xff]
      %v706 = vld [vmem:[%s216 + $0xf8] sm:$0xff]
      %v707 = vld [vmem:[%s216 + $0x100] sm:$0xff]
      %v708 = vld [vmem:[%s216 + $0x108] sm:$0xff]
      %v709 = vld [vmem:[%s216 + $0x110] sm:$0xff]
      %v710 = vld [vmem:[%s216 + $0x118] sm:$0xff]
      %v711 = vld [vmem:[%s216 + $0x120] sm:$0xff]
      %v712 = vld [vmem:[%s216 + $0x128] sm:$0xff]
      %v713 = vld [vmem:[%s216 + $0x130] sm:$0xff]
      %v714 = vld [vmem:[%s216 + $0x138] sm:$0xff]
      %v715 = vld [vmem:[%s216 + $0x140] sm:$0xff]
      %v716 = vld [vmem:[%s216 + $0x148] sm:$0xff]
      %v717 = vld [vmem:[%s216 + $0x150] sm:$0xff]
      %v718 = vld [vmem:[%s216 + $0x158] sm:$0xff]
      %v719 = vld [vmem:[%s216 + $0x160] sm:$0xff]
      %v720 = vld [vmem:[%s216 + $0x168] sm:$0xff]
      %v721 = vld [vmem:[%s216 + $0x170] sm:$0xff]
      %v722 = vld [vmem:[%s216 + $0x178] sm:$0xff]
      %v723 = vld [vmem:[%s216 + $0x180] sm:$0xff]
      %v724 = vld [vmem:[%s216 + $0x188] sm:$0xff]
      %v725 = vld [vmem:[%s216 + $0x190] sm:$0xff]
      %v726 = vld [vmem:[%s216 + $0x198] sm:$0xff]
      %v727 = vld [vmem:[%s216 + $0x1a0] sm:$0xff]
      %v728 = vld [vmem:[%s216 + $0x1a8] sm:$0xff]
      %v729 = vld [vmem:[%s216 + $0x1b0] sm:$0xff]
      %v730 = vld [vmem:[%s216 + $0x1b8] sm:$0xff]
      %v731 = vld [vmem:[%s216 + $0x1c0] sm:$0xff]
      %v732 = vld [vmem:[%s216 + $0x1c8] sm:$0xff]
      %v733 = vld [vmem:[%s216 + $0x1d0] sm:$0xff]
      %v734 = vld [vmem:[%s216 + $0x1d8] sm:$0xff]
      %v735 = vld [vmem:[%s216 + $0x1e0] sm:$0xff]
      %v736 = vld [vmem:[%s216 + $0x1e8] sm:$0xff]
      %v737 = vld [vmem:[%s216 + $0x1f0] sm:$0xff]
      %v738 = vld [vmem:[%s216 + $0x1f8] sm:$0xff]
      %739 = vset.pattern.permute.xlu0 0
      %740 = vperm.xlu0 %739, %v675
      %v741 = vpop.permute.xlu0 %740
      %742 = vset.pattern.permute.xlu0 0
      %743 = vperm.xlu0 %742, %v676
      %v744 = vpop.permute.xlu0 %743
      %745 = vset.pattern.permute.xlu0 0
      %746 = vperm.xlu0 %745, %v677
      %v747 = vpop.permute.xlu0 %746
      %748 = vset.pattern.permute.xlu0 0
      %749 = vperm.xlu0 %748, %v678
      %v750 = vpop.permute.xlu0 %749
      %751 = vset.pattern.permute.xlu0 0
      %752 = vperm.xlu0 %751, %v679
      %v753 = vpop.permute.xlu0 %752
      %754 = vset.pattern.permute.xlu0 0
      %755 = vperm.xlu0 %754, %v680
      %v756 = vpop.permute.xlu0 %755
      %757 = vset.pattern.permute.xlu0 0
      %758 = vperm.xlu0 %757, %v681
      %v759 = vpop.permute.xlu0 %758
      %760 = vset.pattern.permute.xlu0 0
      %761 = vperm.xlu0 %760, %v682
      %v762 = vpop.permute.xlu0 %761
      %763 = vset.pattern.permute.xlu0 0
      %764 = vperm.xlu0 %763, %v683
      %v765 = vpop.permute.xlu0 %764
      %766 = vset.pattern.permute.xlu0 0
      %767 = vperm.xlu0 %766, %v684
      %v768 = vpop.permute.xlu0 %767
      %769 = vset.pattern.permute.xlu0 0
      %770 = vperm.xlu0 %769, %v685
      %v771 = vpop.permute.xlu0 %770
      %772 = vset.pattern.permute.xlu0 0
      %773 = vperm.xlu0 %772, %v686
      %v774 = vpop.permute.xlu0 %773
      %775 = vset.pattern.permute.xlu0 0
      %776 = vperm.xlu0 %775, %v687
      %v777 = vpop.permute.xlu0 %776
      %778 = vset.pattern.permute.xlu0 0
      %779 = vperm.xlu0 %778, %v688
      %v780 = vpop.permute.xlu0 %779
      %781 = vset.pattern.permute.xlu0 0
      %782 = vperm.xlu0 %781, %v689
      %v783 = vpop.permute.xlu0 %782
      %784 = vset.pattern.permute.xlu0 0
      %785 = vperm.xlu0 %784, %v690
      %v786 = vpop.permute.xlu0 %785
      %787 = vset.pattern.permute.xlu0 0
      %788 = vperm.xlu0 %787, %v691
      %v789 = vpop.permute.xlu0 %788
      %790 = vset.pattern.permute.xlu0 0
      %791 = vperm.xlu0 %790, %v692
      %v792 = vpop.permute.xlu0 %791
      %793 = vset.pattern.permute.xlu0 0
      %794 = vperm.xlu0 %793, %v693
      %v795 = vpop.permute.xlu0 %794
      %796 = vset.pattern.permute.xlu0 0
      %797 = vperm.xlu0 %796, %v694
      %v798 = vpop.permute.xlu0 %797
      %799 = vset.pattern.permute.xlu0 0
      %800 = vperm.xlu0 %799, %v695
      %v801 = vpop.permute.xlu0 %800
      %802 = vset.pattern.permute.xlu0 0
      %803 = vperm.xlu0 %802, %v696
      %v804 = vpop.permute.xlu0 %803
      %805 = vset.pattern.permute.xlu0 0
      %806 = vperm.xlu0 %805, %v697
      %v807 = vpop.permute.xlu0 %806
      %808 = vset.pattern.permute.xlu0 0
      %809 = vperm.xlu0 %808, %v698
      %v810 = vpop.permute.xlu0 %809
      %811 = vset.pattern.permute.xlu0 0
      %812 = vperm.xlu0 %811, %v699
      %v813 = vpop.permute.xlu0 %812
      %814 = vset.pattern.permute.xlu0 0
      %815 = vperm.xlu0 %814, %v700
      %v816 = vpop.permute.xlu0 %815
      %817 = vset.pattern.permute.xlu0 0
      %818 = vperm.xlu0 %817, %v701
      %v819 = vpop.permute.xlu0 %818
      %820 = vset.pattern.permute.xlu0 0
      %821 = vperm.xlu0 %820, %v702
      %v822 = vpop.permute.xlu0 %821
      %823 = vset.pattern.permute.xlu0 0
      %824 = vperm.xlu0 %823, %v703
      %v825 = vpop.permute.xlu0 %824
      %826 = vset.pattern.permute.xlu0 0
      %827 = vperm.xlu0 %826, %v704
      %v828 = vpop.permute.xlu0 %827
      %829 = vset.pattern.permute.xlu0 0
      %830 = vperm.xlu0 %829, %v705
      %v831 = vpop.permute.xlu0 %830
      %832 = vset.pattern.permute.xlu0 0
      %833 = vperm.xlu0 %832, %v706
      %v834 = vpop.permute.xlu0 %833
      %835 = vset.pattern.permute.xlu0 0
      %836 = vperm.xlu0 %835, %v707
      %v837 = vpop.permute.xlu0 %836
      %838 = vset.pattern.permute.xlu0 0
      %839 = vperm.xlu0 %838, %v708
      %v840 = vpop.permute.xlu0 %839
      %841 = vset.pattern.permute.xlu0 0
      %842 = vperm.xlu0 %841, %v709
      %v843 = vpop.permute.xlu0 %842
      %844 = vset.pattern.permute.xlu0 0
      %845 = vperm.xlu0 %844, %v710
      %v846 = vpop.permute.xlu0 %845
      %847 = vset.pattern.permute.xlu0 0
      %848 = vperm.xlu0 %847, %v711
      %v849 = vpop.permute.xlu0 %848
      %850 = vset.pattern.permute.xlu0 0
      %851 = vperm.xlu0 %850, %v712
      %v852 = vpop.permute.xlu0 %851
      %853 = vset.pattern.permute.xlu0 0
      %854 = vperm.xlu0 %853, %v713
      %v855 = vpop.permute.xlu0 %854
      %856 = vset.pattern.permute.xlu0 0
      %857 = vperm.xlu0 %856, %v714
      %v858 = vpop.permute.xlu0 %857
      %859 = vset.pattern.permute.xlu0 0
      %860 = vperm.xlu0 %859, %v715
      %v861 = vpop.permute.xlu0 %860
      %862 = vset.pattern.permute.xlu0 0
      %863 = vperm.xlu0 %862, %v716
      %v864 = vpop.permute.xlu0 %863
      %865 = vset.pattern.permute.xlu0 0
      %866 = vperm.xlu0 %865, %v717
      %v867 = vpop.permute.xlu0 %866
      %868 = vset.pattern.permute.xlu0 0
      %869 = vperm.xlu0 %868, %v718
      %v870 = vpop.permute.xlu0 %869
      %871 = vset.pattern.permute.xlu0 0
      %872 = vperm.xlu0 %871, %v719
      %v873 = vpop.permute.xlu0 %872
      %874 = vset.pattern.permute.xlu0 0
      %875 = vperm.xlu0 %874, %v720
      %v876 = vpop.permute.xlu0 %875
      %877 = vset.pattern.permute.xlu0 0
      %878 = vperm.xlu0 %877, %v721
      %v879 = vpop.permute.xlu0 %878
      %880 = vset.pattern.permute.xlu0 0
      %881 = vperm.xlu0 %880, %v722
      %v882 = vpop.permute.xlu0 %881
      %883 = vset.pattern.permute.xlu0 0
      %884 = vperm.xlu0 %883, %v723
      %v885 = vpop.permute.xlu0 %884
      %886 = vset.pattern.permute.xlu0 0
      %887 = vperm.xlu0 %886, %v724
      %v888 = vpop.permute.xlu0 %887
      %889 = vset.pattern.permute.xlu0 0
      %890 = vperm.xlu0 %889, %v725
      %v891 = vpop.permute.xlu0 %890
      %892 = vset.pattern.permute.xlu0 0
      %893 = vperm.xlu0 %892, %v726
      %v894 = vpop.permute.xlu0 %893
      %895 = vset.pattern.permute.xlu0 0
      %896 = vperm.xlu0 %895, %v727
      %v897 = vpop.permute.xlu0 %896
      %898 = vset.pattern.permute.xlu0 0
      %899 = vperm.xlu0 %898, %v728
      %v900 = vpop.permute.xlu0 %899
      %901 = vset.pattern.permute.xlu0 0
      %902 = vperm.xlu0 %901, %v729
      %v903 = vpop.permute.xlu0 %902
      %904 = vset.pattern.permute.xlu0 0
      %905 = vperm.xlu0 %904, %v730
      %v906 = vpop.permute.xlu0 %905
      %907 = vset.pattern.permute.xlu0 0
      %908 = vperm.xlu0 %907, %v731
      %v909 = vpop.permute.xlu0 %908
      %910 = vset.pattern.permute.xlu0 0
      %911 = vperm.xlu0 %910, %v732
      %v912 = vpop.permute.xlu0 %911
      %913 = vset.pattern.permute.xlu0 0
      %914 = vperm.xlu0 %913, %v733
      %v915 = vpop.permute.xlu0 %914
      %916 = vset.pattern.permute.xlu0 0
      %917 = vperm.xlu0 %916, %v734
      %v918 = vpop.permute.xlu0 %917
      %919 = vset.pattern.permute.xlu0 0
      %920 = vperm.xlu0 %919, %v735
      %v921 = vpop.permute.xlu0 %920
      %922 = vset.pattern.permute.xlu0 0
      %923 = vperm.xlu0 %922, %v736
      %v924 = vpop.permute.xlu0 %923
      %925 = vset.pattern.permute.xlu0 0
      %926 = vperm.xlu0 %925, %v737
      %v927 = vpop.permute.xlu0 %926
      %928 = vset.pattern.permute.xlu0 0
      %929 = vperm.xlu0 %928, %v738
      %v930 = vpop.permute.xlu0 %929
      %vm931 = vcmp.eq.s32.totalorder %v226, %v741
      %vm932 = vcmp.eq.s32.totalorder %v226, %v744
      %vm933 = vcmp.eq.s32.totalorder %v226, %v747
      %vm934 = vcmp.eq.s32.totalorder %v226, %v750
      %vm935 = vcmp.eq.s32.totalorder %v226, %v753
      %vm936 = vcmp.eq.s32.totalorder %v226, %v756
      %vm937 = vcmp.eq.s32.totalorder %v226, %v759
      %vm938 = vcmp.eq.s32.totalorder %v226, %v762
      %vm939 = vcmp.eq.s32.totalorder %v226, %v765
      %vm940 = vcmp.eq.s32.totalorder %v226, %v768
      %vm941 = vcmp.eq.s32.totalorder %v226, %v771
      %vm942 = vcmp.eq.s32.totalorder %v226, %v774
      %vm943 = vcmp.eq.s32.totalorder %v226, %v777
      %vm944 = vcmp.eq.s32.totalorder %v226, %v780
      %vm945 = vcmp.eq.s32.totalorder %v226, %v783
      %vm946 = vcmp.eq.s32.totalorder %v226, %v786
      %vm947 = vcmp.eq.s32.totalorder %v226, %v789
      %vm948 = vcmp.eq.s32.totalorder %v226, %v792
      %vm949 = vcmp.eq.s32.totalorder %v226, %v795
      %vm950 = vcmp.eq.s32.totalorder %v226, %v798
      %vm951 = vcmp.eq.s32.totalorder %v226, %v801
      %vm952 = vcmp.eq.s32.totalorder %v226, %v804
      %vm953 = vcmp.eq.s32.totalorder %v226, %v807
      %vm954 = vcmp.eq.s32.totalorder %v226, %v810
      %vm955 = vcmp.eq.s32.totalorder %v226, %v813
      %vm956 = vcmp.eq.s32.totalorder %v226, %v816
      %vm957 = vcmp.eq.s32.totalorder %v226, %v819
      %vm958 = vcmp.eq.s32.totalorder %v226, %v822
      %vm959 = vcmp.eq.s32.totalorder %v226, %v825
      %vm960 = vcmp.eq.s32.totalorder %v226, %v828
      %vm961 = vcmp.eq.s32.totalorder %v226, %v831
      %vm962 = vcmp.eq.s32.totalorder %v226, %v834
      %vm963 = vcmp.eq.s32.totalorder %v226, %v837
      %vm964 = vcmp.eq.s32.totalorder %v226, %v840
      %vm965 = vcmp.eq.s32.totalorder %v226, %v843
      %vm966 = vcmp.eq.s32.totalorder %v226, %v846
      %vm967 = vcmp.eq.s32.totalorder %v226, %v849
      %vm968 = vcmp.eq.s32.totalorder %v226, %v852
      %vm969 = vcmp.eq.s32.totalorder %v226, %v855
      %vm970 = vcmp.eq.s32.totalorder %v226, %v858
      %vm971 = vcmp.eq.s32.totalorder %v226, %v861
      %vm972 = vcmp.eq.s32.totalorder %v226, %v864
      %vm973 = vcmp.eq.s32.totalorder %v226, %v867
      %vm974 = vcmp.eq.s32.totalorder %v226, %v870
      %vm975 = vcmp.eq.s32.totalorder %v226, %v873
      %vm976 = vcmp.eq.s32.totalorder %v226, %v876
      %vm977 = vcmp.eq.s32.totalorder %v226, %v879
      %vm978 = vcmp.eq.s32.totalorder %v226, %v882
      %vm979 = vcmp.eq.s32.totalorder %v226, %v885
      %vm980 = vcmp.eq.s32.totalorder %v226, %v888
      %vm981 = vcmp.eq.s32.totalorder %v226, %v891
      %vm982 = vcmp.eq.s32.totalorder %v226, %v894
      %vm983 = vcmp.eq.s32.totalorder %v226, %v897
      %vm984 = vcmp.eq.s32.totalorder %v226, %v900
      %vm985 = vcmp.eq.s32.totalorder %v226, %v903
      %vm986 = vcmp.eq.s32.totalorder %v226, %v906
      %vm987 = vcmp.eq.s32.totalorder %v226, %v909
      %vm988 = vcmp.eq.s32.totalorder %v226, %v912
      %vm989 = vcmp.eq.s32.totalorder %v226, %v915
      %vm990 = vcmp.eq.s32.totalorder %v226, %v918
      %vm991 = vcmp.eq.s32.totalorder %v226, %v921
      %vm992 = vcmp.eq.s32.totalorder %v226, %v924
      %vm993 = vcmp.eq.s32.totalorder %v226, %v927
      %vm994 = vcmp.eq.s32.totalorder %v226, %v930
      %v995 = vsel %vm931, 1, 0
      %v996 = vsel %vm932, 1, 0
      %v997 = vsel %vm933, 1, 0
      %v998 = vsel %vm934, 1, 0
      %v999 = vsel %vm935, 1, 0
      %v1000 = vsel %vm936, 1, 0
      %v1001 = vsel %vm937, 1, 0
      %v1002 = vsel %vm938, 1, 0
      %v1003 = vsel %vm939, 1, 0
      %v1004 = vsel %vm940, 1, 0
      %v1005 = vsel %vm941, 1, 0
      %v1006 = vsel %vm942, 1, 0
      %v1007 = vsel %vm943, 1, 0
      %v1008 = vsel %vm944, 1, 0
      %v1009 = vsel %vm945, 1, 0
      %v1010 = vsel %vm946, 1, 0
      %v1011 = vsel %vm947, 1, 0
      %v1012 = vsel %vm948, 1, 0
      %v1013 = vsel %vm949, 1, 0
      %v1014 = vsel %vm950, 1, 0
      %v1015 = vsel %vm951, 1, 0
      %v1016 = vsel %vm952, 1, 0
      %v1017 = vsel %vm953, 1, 0
      %v1018 = vsel %vm954, 1, 0
      %v1019 = vsel %vm955, 1, 0
      %v1020 = vsel %vm956, 1, 0
      %v1021 = vsel %vm957, 1, 0
      %v1022 = vsel %vm958, 1, 0
      %v1023 = vsel %vm959, 1, 0
      %v1024 = vsel %vm960, 1, 0
      %v1025 = vsel %vm961, 1, 0
      %v1026 = vsel %vm962, 1, 0
      %v1027 = vsel %vm963, 1, 0
      %v1028 = vsel %vm964, 1, 0
      %v1029 = vsel %vm965, 1, 0
      %v1030 = vsel %vm966, 1, 0
      %v1031 = vsel %vm967, 1, 0
      %v1032 = vsel %vm968, 1, 0
      %v1033 = vsel %vm969, 1, 0
      %v1034 = vsel %vm970, 1, 0
      %v1035 = vsel %vm971, 1, 0
      %v1036 = vsel %vm972, 1, 0
      %v1037 = vsel %vm973, 1, 0
      %v1038 = vsel %vm974, 1, 0
      %v1039 = vsel %vm975, 1, 0
      %v1040 = vsel %vm976, 1, 0
      %v1041 = vsel %vm977, 1, 0
      %v1042 = vsel %vm978, 1, 0
      %v1043 = vsel %vm979, 1, 0
      %v1044 = vsel %vm980, 1, 0
      %v1045 = vsel %vm981, 1, 0
      %v1046 = vsel %vm982, 1, 0
      %v1047 = vsel %vm983, 1, 0
      %v1048 = vsel %vm984, 1, 0
      %v1049 = vsel %vm985, 1, 0
      %v1050 = vsel %vm986, 1, 0
      %v1051 = vsel %vm987, 1, 0
      %v1052 = vsel %vm988, 1, 0
      %v1053 = vsel %vm989, 1, 0
      %v1054 = vsel %vm990, 1, 0
      %v1055 = vsel %vm991, 1, 0
      %v1056 = vsel %vm992, 1, 0
      %v1057 = vsel %vm993, 1, 0
      %v1058 = vsel %vm994, 1, 0
      %v1059 = vcvt.s32.f32 %v995
      %v1060 = vcvt.s32.f32 %v996
      %v1061 = vcvt.s32.f32 %v997
      %v1062 = vcvt.s32.f32 %v998
      %v1063 = vcvt.s32.f32 %v999
      %v1064 = vcvt.s32.f32 %v1000
      %v1065 = vcvt.s32.f32 %v1001
      %v1066 = vcvt.s32.f32 %v1002
      %v1067 = vcvt.s32.f32 %v1003
      %v1068 = vcvt.s32.f32 %v1004
      %v1069 = vcvt.s32.f32 %v1005
      %v1070 = vcvt.s32.f32 %v1006
      %v1071 = vcvt.s32.f32 %v1007
      %v1072 = vcvt.s32.f32 %v1008
      %v1073 = vcvt.s32.f32 %v1009
      %v1074 = vcvt.s32.f32 %v1010
      %v1075 = vcvt.s32.f32 %v1011
      %v1076 = vcvt.s32.f32 %v1012
      %v1077 = vcvt.s32.f32 %v1013
      %v1078 = vcvt.s32.f32 %v1014
      %v1079 = vcvt.s32.f32 %v1015
      %v1080 = vcvt.s32.f32 %v1016
      %v1081 = vcvt.s32.f32 %v1017
      %v1082 = vcvt.s32.f32 %v1018
      %v1083 = vcvt.s32.f32 %v1019
      %v1084 = vcvt.s32.f32 %v1020
      %v1085 = vcvt.s32.f32 %v1021
      %v1086 = vcvt.s32.f32 %v1022
      %v1087 = vcvt.s32.f32 %v1023
      %v1088 = vcvt.s32.f32 %v1024
      %v1089 = vcvt.s32.f32 %v1025
      %v1090 = vcvt.s32.f32 %v1026
      %v1091 = vcvt.s32.f32 %v1027
      %v1092 = vcvt.s32.f32 %v1028
      %v1093 = vcvt.s32.f32 %v1029
      %v1094 = vcvt.s32.f32 %v1030
      %v1095 = vcvt.s32.f32 %v1031
      %v1096 = vcvt.s32.f32 %v1032
      %v1097 = vcvt.s32.f32 %v1033
      %v1098 = vcvt.s32.f32 %v1034
      %v1099 = vcvt.s32.f32 %v1035
      %v1100 = vcvt.s32.f32 %v1036
      %v1101 = vcvt.s32.f32 %v1037
      %v1102 = vcvt.s32.f32 %v1038
      %v1103 = vcvt.s32.f32 %v1039
      %v1104 = vcvt.s32.f32 %v1040
      %v1105 = vcvt.s32.f32 %v1041
      %v1106 = vcvt.s32.f32 %v1042
      %v1107 = vcvt.s32.f32 %v1043
      %v1108 = vcvt.s32.f32 %v1044
      %v1109 = vcvt.s32.f32 %v1045
      %v1110 = vcvt.s32.f32 %v1046
      %v1111 = vcvt.s32.f32 %v1047
      %v1112 = vcvt.s32.f32 %v1048
      %v1113 = vcvt.s32.f32 %v1049
      %v1114 = vcvt.s32.f32 %v1050
      %v1115 = vcvt.s32.f32 %v1051
      %v1116 = vcvt.s32.f32 %v1052
      %v1117 = vcvt.s32.f32 %v1053
      %v1118 = vcvt.s32.f32 %v1054
      %v1119 = vcvt.s32.f32 %v1055
      %v1120 = vcvt.s32.f32 %v1056
      %v1121 = vcvt.s32.f32 %v1057
      %v1122 = vcvt.s32.f32 %v1058
      %v1123 = vld [vmem:[%s2] sm:$0xff]
      %v1124 = vld [vmem:[%s2 + $0x8] sm:$0xff]
      %v1125 = vld [vmem:[%s2 + $0x10] sm:$0xff]
      %v1126 = vld [vmem:[%s2 + $0x18] sm:$0xff]
      %v1127 = vld [vmem:[%s2 + $0x20] sm:$0xff]
      %v1128 = vld [vmem:[%s2 + $0x28] sm:$0xff]
      %v1129 = vld [vmem:[%s2 + $0x30] sm:$0xff]
      %v1130 = vld [vmem:[%s2 + $0x38] sm:$0xff]
      %v1131 = vld [vmem:[%s2 + $0x40] sm:$0xff]
      %v1132 = vld [vmem:[%s2 + $0x48] sm:$0xff]
      %v1133 = vld [vmem:[%s2 + $0x50] sm:$0xff]
      %v1134 = vld [vmem:[%s2 + $0x58] sm:$0xff]
      %v1135 = vld [vmem:[%s2 + $0x60] sm:$0xff]
      %v1136 = vld [vmem:[%s2 + $0x68] sm:$0xff]
      %v1137 = vld [vmem:[%s2 + $0x70] sm:$0xff]
      %v1138 = vld [vmem:[%s2 + $0x78] sm:$0xff]
      %v1139 = vld [vmem:[%s3] sm:$0xff]
      %v1140 = vld [vmem:[%s3 + $0x8] sm:$0xff]
      %v1141 = vld [vmem:[%s3 + $0x10] sm:$0xff]
      %v1142 = vld [vmem:[%s3 + $0x18] sm:$0xff]
      %v1143 = vld [vmem:[%s3 + $0x20] sm:$0xff]
      %v1144 = vld [vmem:[%s3 + $0x28] sm:$0xff]
      %v1145 = vld [vmem:[%s3 + $0x30] sm:$0xff]
      %v1146 = vld [vmem:[%s3 + $0x38] sm:$0xff]
      %v1147 = vld [vmem:[%s3 + $0x40] sm:$0xff]
      %v1148 = vld [vmem:[%s3 + $0x48] sm:$0xff]
      %v1149 = vld [vmem:[%s3 + $0x50] sm:$0xff]
      %v1150 = vld [vmem:[%s3 + $0x58] sm:$0xff]
      %v1151 = vld [vmem:[%s3 + $0x60] sm:$0xff]
      %v1152 = vld [vmem:[%s3 + $0x68] sm:$0xff]
      %v1153 = vld [vmem:[%s3 + $0x70] sm:$0xff]
      %v1154 = vld [vmem:[%s3 + $0x78] sm:$0xff]
      %vm1155 = vcmask 523264
      %v1157 = vsel %vm1155, %v1059, 0
      %v1160 = vsel %vm1155, %v1060, 0
      %v1163 = vsel %vm1155, %v1061, 0
      %v1166 = vsel %vm1155, %v1062, 0
      %v1169 = vsel %vm1155, %v1063, 0
      %v1172 = vsel %vm1155, %v1064, 0
      %v1175 = vsel %vm1155, %v1065, 0
      %v1178 = vsel %vm1155, %v1066, 0
      %v1181 = vsel %vm1155, %v1067, 0
      %v1184 = vsel %vm1155, %v1068, 0
      %v1187 = vsel %vm1155, %v1069, 0
      %v1190 = vsel %vm1155, %v1070, 0
      %v1193 = vsel %vm1155, %v1071, 0
      %v1196 = vsel %vm1155, %v1072, 0
      %v1199 = vsel %vm1155, %v1073, 0
      %v1202 = vsel %vm1155, %v1074, 0
      %v1205 = vsel %vm1155, %v1075, 0
      %v1208 = vsel %vm1155, %v1076, 0
      %v1211 = vsel %vm1155, %v1077, 0
      %v1214 = vsel %vm1155, %v1078, 0
      %v1217 = vsel %vm1155, %v1079, 0
      %v1220 = vsel %vm1155, %v1080, 0
      %v1223 = vsel %vm1155, %v1081, 0
      %v1226 = vsel %vm1155, %v1082, 0
      %v1229 = vsel %vm1155, %v1083, 0
      %v1232 = vsel %vm1155, %v1084, 0
      %v1235 = vsel %vm1155, %v1085, 0
      %v1238 = vsel %vm1155, %v1086, 0
      %v1241 = vsel %vm1155, %v1087, 0
      %v1244 = vsel %vm1155, %v1088, 0
      %v1247 = vsel %vm1155, %v1089, 0
      %v1250 = vsel %vm1155, %v1090, 0
      %v1253 = vsel %vm1155, %v1091, 0
      %v1256 = vsel %vm1155, %v1092, 0
      %v1259 = vsel %vm1155, %v1093, 0
      %v1262 = vsel %vm1155, %v1094, 0
      %v1265 = vsel %vm1155, %v1095, 0
      %v1268 = vsel %vm1155, %v1096, 0
      %v1271 = vsel %vm1155, %v1097, 0
      %v1274 = vsel %vm1155, %v1098, 0
      %v1277 = vsel %vm1155, %v1099, 0
      %v1280 = vsel %vm1155, %v1100, 0
      %v1283 = vsel %vm1155, %v1101, 0
      %v1286 = vsel %vm1155, %v1102, 0
      %v1289 = vsel %vm1155, %v1103, 0
      %v1292 = vsel %vm1155, %v1104, 0
      %v1295 = vsel %vm1155, %v1105, 0
      %v1298 = vsel %vm1155, %v1106, 0
      %v1301 = vsel %vm1155, %v1107, 0
      %v1304 = vsel %vm1155, %v1108, 0
      %v1307 = vsel %vm1155, %v1109, 0
      %v1310 = vsel %vm1155, %v1110, 0
      %v1313 = vsel %vm1155, %v1111, 0
      %v1316 = vsel %vm1155, %v1112, 0
      %v1319 = vsel %vm1155, %v1113, 0
      %v1322 = vsel %vm1155, %v1114, 0
      %v1325 = vsel %vm1155, %v1115, 0
      %v1328 = vsel %vm1155, %v1116, 0
      %v1331 = vsel %vm1155, %v1117, 0
      %v1334 = vsel %vm1155, %v1118, 0
      %v1337 = vsel %vm1155, %v1119, 0
      %v1340 = vsel %vm1155, %v1120, 0
      %v1343 = vsel %vm1155, %v1121, 0
      %v1346 = vsel %vm1155, %v1122, 0
      %1348 = vmatprep.subr.mxu0 %v1140
      %1349 = vmatpush1.msra.mxu0 %v1139
      %1350 = vmatprep.subr.mxu0 %v1142
      %1351 = vmatpush1.msra.mxu0 %v1141
      %1352 = vmatprep.subr.mxu0 %v1144
      %1353 = vmatpush1.msra.mxu0 %v1143
      %1354 = vmatprep.subr.mxu0 %v1146
      %1355 = vmatpush1.msra.mxu0 %v1145
      %1356 = vmatprep.subr.mxu0 %v1148
      %1357 = vmatpush1.msra.mxu0 %v1147
      %1358 = vmatprep.subr.mxu0 %v1150
      %1359 = vmatpush1.msra.mxu0 %v1149
      %1360 = vmatprep.subr.mxu0 %v1152
      %1361 = vmatpush1.msra.mxu0 %v1151
      %1362 = vmatprep.subr.mxu0 %v1154
      %1363 = vmatpush1.msra.mxu0 %v1153
      %1364 = vmatprep.subr.mxu0 0.0
      %1365 = vmatpush1.msra.mxu0 0.0
      %1366 = vmatprep.subr.mxu0 0.0
      %1367 = vmatpush1.msra.mxu0 0.0
      %1368 = vmatprep.subr.mxu0 0.0
      %1369 = vmatpush1.msra.mxu0 0.0
      %1370 = vmatprep.subr.mxu0 0.0
      %1371 = vmatpush1.msra.mxu0 0.0
      %1372 = vmatprep.subr.mxu0 0.0
      %1373 = vmatpush1.msra.mxu0 0.0
      %1374 = vmatprep.subr.mxu0 0.0
      %1375 = vmatpush1.msra.mxu0 0.0
      %1376 = vmatprep.subr.mxu0 0.0
      %1377 = vmatpush1.msra.mxu0 0.0
      %1378 = vmatprep.subr.mxu0 0.0
      %1379 = vmatpush1.msra.mxu0 0.0
      %1380 = vmatprep.subr.mxu0 0.0
      %1381 = vmatpush1.msra.mxu0 0.0
      %1382 = vmatprep.subr.mxu0 0.0
      %1383 = vmatpush1.msra.mxu0 0.0
      %1384 = vmatprep.subr.mxu0 0.0
      %1385 = vmatpush1.msra.mxu0 0.0
      %1386 = vmatprep.subr.mxu0 0.0
      %1387 = vmatpush1.msra.mxu0 0.0
      %1388 = vmatprep.subr.mxu0 0.0
      %1389 = vmatpush1.msra.mxu0 0.0
      %1390 = vmatprep.subr.mxu0 0.0
      %1391 = vmatpush1.msra.mxu0 0.0
      %1392 = vmatprep.subr.mxu0 0.0
      %1393 = vmatpush1.msra.mxu0 0.0
      %1394 = vmatprep.subr.mxu0 0.0
      %1395 = vmatpush1.msra.mxu0 0.0
      %1396 = vmatprep.subr.mxu0 0.0
      %1397 = vmatpush1.msra.mxu0 0.0
      %1398 = vmatprep.subr.mxu0 0.0
      %1399 = vmatpush1.msra.mxu0 0.0
      %1400 = vmatprep.subr.mxu0 0.0
      %1401 = vmatpush1.msra.mxu0 0.0
      %1402 = vmatprep.subr.mxu0 0.0
      %1403 = vmatpush1.msra.mxu0 0.0
      %1404 = vmatprep.subr.mxu0 0.0
      %1405 = vmatpush1.msra.mxu0 0.0
      %1406 = vmatprep.subr.mxu0 0.0
      %1407 = vmatpush1.msra.mxu0 0.0
      %1408 = vmatprep.subr.mxu0 0.0
      %1409 = vmatpush1.msra.mxu0 0.0
      %1410 = vmatprep.subr.mxu0 0.0
      %1411 = vmatpush1.msra.mxu0 0.0
      %1412 = vmatprep.mubr.f32.mxu0 0.0
      %1413 = vmatmul.mubr.f32.gmra.mrb[0].mxu0 %v1157
      %v1414 = vpop.f32.mrb[0].mxu0
      %v1415 = vadd.f32 0.0, %v1414
      %v1416 = vpop.f32.mrb[0].mxu0
      %v1417 = vadd.f32 0.0, %v1416
      %1418 = vmatprep.mubr.f32.mxu0 0.0
      %1419 = vmatmul.mubr.f32.gmra.mrb[0].mxu0 %v1160
      %v1420 = vpop.f32.mrb[0].mxu0
      %v1421 = vadd.f32 0.0, %v1420
      %v1422 = vpop.f32.mrb[0].mxu0
      %v1423 = vadd.f32 0.0, %v1422
      %1424 = vmatprep.mubr.f32.mxu0 0.0
      %1425 = vmatmul.mubr.f32.gmra.mrb[0].mxu0 %v1163
      %v1426 = vpop.f32.mrb[0].mxu0
      %v1427 = vadd.f32 0.0, %v1426
      %v1428 = vpop.f32.mrb[0].mxu0
      %v1429 = vadd.f32 0.0, %v1428
      %1430 = vmatprep.mubr.f32.mxu0 0.0
      %1431 = vmatmul.mubr.f32.gmra.mrb[0].mxu0 %v1166
      %v1432 = vpop.f32.mrb[0].mxu0
      %v1433 = vadd.f32 0.0, %v1432
      %v1434 = vpop.f32.mrb[0].mxu0
      %v1435 = vadd.f32 0.0, %v1434
      %1436 = vmatprep.mubr.f32.mxu0 0.0
      %1437 = vmatmul.mubr.f32.gmra.mrb[0].mxu0 %v1169
      %v1438 = vpop.f32.mrb[0].mxu0
      %v1439 = vadd.f32 0.0, %v1438
      %v1440 = vpop.f32.mrb[0].mxu0
      %v1441 = vadd.f32 0.0, %v1440
      %1442 = vmatprep.mubr.f32.mxu0 0.0
      %1443 = vmatmul.mubr.f32.gmra.mrb[0].mxu0 %v1172
      %v1444 = vpop.f32.mrb[0].mxu0
      %v1445 = vadd.f32 0.0, %v1444
      %v1446 = vpop.f32.mrb[0].mxu0
      %v1447 = vadd.f32 0.0, %v1446
      %1448 = vmatprep.mubr.f32.mxu0 0.0
      %1449 = vmatmul.mubr.f32.gmra.mrb[0].mxu0 %v1175
      %v1450 = vpop.f32.mrb[0].mxu0
      %v1451 = vadd.f32 0.0, %v1450
      %v1452 = vpop.f32.mrb[0].mxu0
      %v1453 = vadd.f32 0.0, %v1452
      %1454 = vmatprep.mubr.f32.mxu0 0.0
      %1455 = vmatmul.mubr.f32.gmra.mrb[0].mxu0 %v1178
      %v1456 = vpop.f32.mrb[0].mxu0
      %v1457 = vadd.f32 0.0, %v1456
      %v1458 = vpop.f32.mrb[0].mxu0
      %v1459 = vadd.f32 0.0, %v1458
      %1460 = vmatprep.mubr.f32.mxu0 0.0
      %1461 = vmatmul.mubr.f32.gmra.mrb[0].mxu0 %v1181
      %v1462 = vpop.f32.mrb[0].mxu0
      %v1463 = vadd.f32 0.0, %v1462
      %v1464 = vpop.f32.mrb[0].mxu0
      %v1465 = vadd.f32 0.0, %v1464
      %1466 = vmatprep.mubr.f32.mxu0 0.0
      %1467 = vmatmul.mubr.f32.gmra.mrb[0].mxu0 %v1184
      %v1468 = vpop.f32.mrb[0].mxu0
      %v1469 = vadd.f32 0.0, %v1468
      %v1470 = vpop.f32.mrb[0].mxu0
      %v1471 = vadd.f32 0.0, %v1470
      %1472 = vmatprep.mubr.f32.mxu0 0.0
      %1473 = vmatmul.mubr.f32.gmra.mrb[0].mxu0 %v1187
      %v1474 = vpop.f32.mrb[0].mxu0
      %v1475 = vadd.f32 0.0, %v1474
      %v1476 = vpop.f32.mrb[0].mxu0
      %v1477 = vadd.f32 0.0, %v1476
      %1478 = vmatprep.mubr.f32.mxu0 0.0
      %1479 = vmatmul.mubr.f32.gmra.mrb[0].mxu0 %v1190
      %v1480 = vpop.f32.mrb[0].mxu0
      %v1481 = vadd.f32 0.0, %v1480
      %v1482 = vpop.f32.mrb[0].mxu0
      %v1483 = vadd.f32 0.0, %v1482
      %1484 = vmatprep.mubr.f32.mxu0 0.0
      %1485 = vmatmul.mubr.f32.gmra.mrb[0].mxu0 %v1193
      %v1486 = vpop.f32.mrb[0].mxu0
      %v1487 = vadd.f32 0.0, %v1486
      %v1488 = vpop.f32.mrb[0].mxu0
      %v1489 = vadd.f32 0.0, %v1488
      %1490 = vmatprep.mubr.f32.mxu0 0.0
      %1491 = vmatmul.mubr.f32.gmra.mrb[0].mxu0 %v1196
      %v1492 = vpop.f32.mrb[0].mxu0
      %v1493 = vadd.f32 0.0, %v1492
      %v1494 = vpop.f32.mrb[0].mxu0
      %v1495 = vadd.f32 0.0, %v1494
      %1496 = vmatprep.mubr.f32.mxu0 0.0
      %1497 = vmatmul.mubr.f32.gmra.mrb[0].mxu0 %v1199
      %v1498 = vpop.f32.mrb[0].mxu0
      %v1499 = vadd.f32 0.0, %v1498
      %v1500 = vpop.f32.mrb[0].mxu0
      %v1501 = vadd.f32 0.0, %v1500
      %1502 = vmatprep.mubr.f32.mxu0 0.0
      %1503 = vmatmul.mubr.f32.gmra.mrb[0].mxu0 %v1202
      %v1504 = vpop.f32.mrb[0].mxu0
      %v1505 = vadd.f32 0.0, %v1504
      %v1506 = vpop.f32.mrb[0].mxu0
      %v1507 = vadd.f32 0.0, %v1506
      %1508 = vmatprep.mubr.f32.mxu0 0.0
      %1509 = vmatmul.mubr.f32.gmra.mrb[0].mxu0 %v1205
      %v1510 = vpop.f32.mrb[0].mxu0
      %v1511 = vadd.f32 0.0, %v1510
      %v1512 = vpop.f32.mrb[0].mxu0
      %v1513 = vadd.f32 0.0, %v1512
      %1514 = vmatprep.mubr.f32.mxu0 0.0
      %1515 = vmatmul.mubr.f32.gmra.mrb[0].mxu0 %v1208
      %v1516 = vpop.f32.mrb[0].mxu0
      %v1517 = vadd.f32 0.0, %v1516
      %v1518 = vpop.f32.mrb[0].mxu0
      %v1519 = vadd.f32 0.0, %v1518
      %1520 = vmatprep.mubr.f32.mxu0 0.0
      %1521 = vmatmul.mubr.f32.gmra.mrb[0].mxu0 %v1211
      %v1522 = vpop.f32.mrb[0].mxu0
      %v1523 = vadd.f32 0.0, %v1522
      %v1524 = vpop.f32.mrb[0].mxu0
      %v1525 = vadd.f32 0.0, %v1524
      %1526 = vmatprep.mubr.f32.mxu0 0.0
      %1527 = vmatmul.mubr.f32.gmra.mrb[0].mxu0 %v1214
      %v1528 = vpop.f32.mrb[0].mxu0
      %v1529 = vadd.f32 0.0, %v1528
      %v1530 = vpop.f32.mrb[0].mxu0
      %v1531 = vadd.f32 0.0, %v1530
      %1532 = vmatprep.mubr.f32.mxu0 0.0
      %1533 = vmatmul.mubr.f32.gmra.mrb[0].mxu0 %v1217
      %v1534 = vpop.f32.mrb[0].mxu0
      %v1535 = vadd.f32 0.0, %v1534
      %v1536 = vpop.f32.mrb[0].mxu0
      %v1537 = vadd.f32 0.0, %v1536
      %1538 = vmatprep.mubr.f32.mxu0 0.0
      %1539 = vmatmul.mubr.f32.gmra.mrb[0].mxu0 %v1220
      %v1540 = vpop.f32.mrb[0].mxu0
      %v1541 = vadd.f32 0.0, %v1540
      %v1542 = vpop.f32.mrb[0].mxu0
      %v1543 = vadd.f32 0.0, %v1542
      %1544 = vmatprep.mubr.f32.mxu0 0.0
      %1545 = vmatmul.mubr.f32.gmra.mrb[0].mxu0 %v1223
      %v1546 = vpop.f32.mrb[0].mxu0
      %v1547 = vadd.f32 0.0, %v1546
      %v1548 = vpop.f32.mrb[0].mxu0
      %v1549 = vadd.f32 0.0, %v1548
      %1550 = vmatprep.mubr.f32.mxu0 0.0
      %1551 = vmatmul.mubr.f32.gmra.mrb[0].mxu0 %v1226
      %v1552 = vpop.f32.mrb[0].mxu0
      %v1553 = vadd.f32 0.0, %v1552
      %v1554 = vpop.f32.mrb[0].mxu0
      %v1555 = vadd.f32 0.0, %v1554
      %1556 = vmatprep.mubr.f32.mxu0 0.0
      %1557 = vmatmul.mubr.f32.gmra.mrb[0].mxu0 %v1229
      %v1558 = vpop.f32.mrb[0].mxu0
      %v1559 = vadd.f32 0.0, %v1558
      %v1560 = vpop.f32.mrb[0].mxu0
      %v1561 = vadd.f32 0.0, %v1560
      %1562 = vmatprep.mubr.f32.mxu0 0.0
      %1563 = vmatmul.mubr.f32.gmra.mrb[0].mxu0 %v1232
      %v1564 = vpop.f32.mrb[0].mxu0
      %v1565 = vadd.f32 0.0, %v1564
      %v1566 = vpop.f32.mrb[0].mxu0
      %v1567 = vadd.f32 0.0, %v1566
      %1568 = vmatprep.mubr.f32.mxu0 0.0
      %1569 = vmatmul.mubr.f32.gmra.mrb[0].mxu0 %v1235
      %v1570 = vpop.f32.mrb[0].mxu0
      %v1571 = vadd.f32 0.0, %v1570
      %v1572 = vpop.f32.mrb[0].mxu0
      %v1573 = vadd.f32 0.0, %v1572
      %1574 = vmatprep.mubr.f32.mxu0 0.0
      %1575 = vmatmul.mubr.f32.gmra.mrb[0].mxu0 %v1238
      %v1576 = vpop.f32.mrb[0].mxu0
      %v1577 = vadd.f32 0.0, %v1576
      %v1578 = vpop.f32.mrb[0].mxu0
      %v1579 = vadd.f32 0.0, %v1578
      %1580 = vmatprep.mubr.f32.mxu0 0.0
      %1581 = vmatmul.mubr.f32.gmra.mrb[0].mxu0 %v1241
      %v1582 = vpop.f32.mrb[0].mxu0
      %v1583 = vadd.f32 0.0, %v1582
      %v1584 = vpop.f32.mrb[0].mxu0
      %v1585 = vadd.f32 0.0, %v1584
      %1586 = vmatprep.mubr.f32.mxu0 0.0
      %1587 = vmatmul.mubr.f32.gmra.mrb[0].mxu0 %v1244
      %v1588 = vpop.f32.mrb[0].mxu0
      %v1589 = vadd.f32 0.0, %v1588
      %v1590 = vpop.f32.mrb[0].mxu0
      %v1591 = vadd.f32 0.0, %v1590
      %1592 = vmatprep.mubr.f32.mxu0 0.0
      %1593 = vmatmul.mubr.f32.gmra.mrb[0].mxu0 %v1247
      %v1594 = vpop.f32.mrb[0].mxu0
      %v1595 = vadd.f32 0.0, %v1594
      %v1596 = vpop.f32.mrb[0].mxu0
      %v1597 = vadd.f32 0.0, %v1596
      %1598 = vmatprep.mubr.f32.mxu0 0.0
      %1599 = vmatmul.mubr.f32.gmra.mrb[0].mxu0 %v1250
      %v1600 = vpop.f32.mrb[0].mxu0
      %v1601 = vadd.f32 0.0, %v1600
      %v1602 = vpop.f32.mrb[0].mxu0
      %v1603 = vadd.f32 0.0, %v1602
      %1604 = vmatprep.mubr.f32.mxu0 0.0
      %1605 = vmatmul.mubr.f32.gmra.mrb[0].mxu0 %v1253
      %v1606 = vpop.f32.mrb[0].mxu0
      %v1607 = vadd.f32 0.0, %v1606
      %v1608 = vpop.f32.mrb[0].mxu0
      %v1609 = vadd.f32 0.0, %v1608
      %1610 = vmatprep.mubr.f32.mxu0 0.0
      %1611 = vmatmul.mubr.f32.gmra.mrb[0].mxu0 %v1256
      %v1612 = vpop.f32.mrb[0].mxu0
      %v1613 = vadd.f32 0.0, %v1612
      %v1614 = vpop.f32.mrb[0].mxu0
      %v1615 = vadd.f32 0.0, %v1614
      %1616 = vmatprep.mubr.f32.mxu0 0.0
      %1617 = vmatmul.mubr.f32.gmra.mrb[0].mxu0 %v1259
      %v1618 = vpop.f32.mrb[0].mxu0
      %v1619 = vadd.f32 0.0, %v1618
      %v1620 = vpop.f32.mrb[0].mxu0
      %v1621 = vadd.f32 0.0, %v1620
      %1622 = vmatprep.mubr.f32.mxu0 0.0
      %1623 = vmatmul.mubr.f32.gmra.mrb[0].mxu0 %v1262
      %v1624 = vpop.f32.mrb[0].mxu0
      %v1625 = vadd.f32 0.0, %v1624
      %v1626 = vpop.f32.mrb[0].mxu0
      %v1627 = vadd.f32 0.0, %v1626
      %1628 = vmatprep.mubr.f32.mxu0 0.0
      %1629 = vmatmul.mubr.f32.gmra.mrb[0].mxu0 %v1265
      %v1630 = vpop.f32.mrb[0].mxu0
      %v1631 = vadd.f32 0.0, %v1630
      %v1632 = vpop.f32.mrb[0].mxu0
      %v1633 = vadd.f32 0.0, %v1632
      %1634 = vmatprep.mubr.f32.mxu0 0.0
      %1635 = vmatmul.mubr.f32.gmra.mrb[0].mxu0 %v1268
      %v1636 = vpop.f32.mrb[0].mxu0
      %v1637 = vadd.f32 0.0, %v1636
      %v1638 = vpop.f32.mrb[0].mxu0
      %v1639 = vadd.f32 0.0, %v1638
      %1640 = vmatprep.mubr.f32.mxu0 0.0
      %1641 = vmatmul.mubr.f32.gmra.mrb[0].mxu0 %v1271
      %v1642 = vpop.f32.mrb[0].mxu0
      %v1643 = vadd.f32 0.0, %v1642
      %v1644 = vpop.f32.mrb[0].mxu0
      %v1645 = vadd.f32 0.0, %v1644
      %1646 = vmatprep.mubr.f32.mxu0 0.0
      %1647 = vmatmul.mubr.f32.gmra.mrb[0].mxu0 %v1274
      %v1648 = vpop.f32.mrb[0].mxu0
      %v1649 = vadd.f32 0.0, %v1648
      %v1650 = vpop.f32.mrb[0].mxu0
      %v1651 = vadd.f32 0.0, %v1650
      %1652 = vmatprep.mubr.f32.mxu0 0.0
      %1653 = vmatmul.mubr.f32.gmra.mrb[0].mxu0 %v1277
      %v1654 = vpop.f32.mrb[0].mxu0
      %v1655 = vadd.f32 0.0, %v1654
      %v1656 = vpop.f32.mrb[0].mxu0
      %v1657 = vadd.f32 0.0, %v1656
      %1658 = vmatprep.mubr.f32.mxu0 0.0
      %1659 = vmatmul.mubr.f32.gmra.mrb[0].mxu0 %v1280
      %v1660 = vpop.f32.mrb[0].mxu0
      %v1661 = vadd.f32 0.0, %v1660
      %v1662 = vpop.f32.mrb[0].mxu0
      %v1663 = vadd.f32 0.0, %v1662
      %1664 = vmatprep.mubr.f32.mxu0 0.0
      %1665 = vmatmul.mubr.f32.gmra.mrb[0].mxu0 %v1283
      %v1666 = vpop.f32.mrb[0].mxu0
      %v1667 = vadd.f32 0.0, %v1666
      %v1668 = vpop.f32.mrb[0].mxu0
      %v1669 = vadd.f32 0.0, %v1668
      %1670 = vmatprep.mubr.f32.mxu0 0.0
      %1671 = vmatmul.mubr.f32.gmra.mrb[0].mxu0 %v1286
      %v1672 = vpop.f32.mrb[0].mxu0
      %v1673 = vadd.f32 0.0, %v1672
      %v1674 = vpop.f32.mrb[0].mxu0
      %v1675 = vadd.f32 0.0, %v1674
      %1676 = vmatprep.mubr.f32.mxu0 0.0
      %1677 = vmatmul.mubr.f32.gmra.mrb[0].mxu0 %v1289
      %v1678 = vpop.f32.mrb[0].mxu0
      %v1679 = vadd.f32 0.0, %v1678
      %v1680 = vpop.f32.mrb[0].mxu0
      %v1681 = vadd.f32 0.0, %v1680
      %1682 = vmatprep.mubr.f32.mxu0 0.0
      %1683 = vmatmul.mubr.f32.gmra.mrb[0].mxu0 %v1292
      %v1684 = vpop.f32.mrb[0].mxu0
      %v1685 = vadd.f32 0.0, %v1684
      %v1686 = vpop.f32.mrb[0].mxu0
      %v1687 = vadd.f32 0.0, %v1686
      %1688 = vmatprep.mubr.f32.mxu0 0.0
      %1689 = vmatmul.mubr.f32.gmra.mrb[0].mxu0 %v1295
      %v1690 = vpop.f32.mrb[0].mxu0
      %v1691 = vadd.f32 0.0, %v1690
      %v1692 = vpop.f32.mrb[0].mxu0
      %v1693 = vadd.f32 0.0, %v1692
      %1694 = vmatprep.mubr.f32.mxu0 0.0
      %1695 = vmatmul.mubr.f32.gmra.mrb[0].mxu0 %v1298
      %v1696 = vpop.f32.mrb[0].mxu0
      %v1697 = vadd.f32 0.0, %v1696
      %v1698 = vpop.f32.mrb[0].mxu0
      %v1699 = vadd.f32 0.0, %v1698
      %1700 = vmatprep.mubr.f32.mxu0 0.0
      %1701 = vmatmul.mubr.f32.gmra.mrb[0].mxu0 %v1301
      %v1702 = vpop.f32.mrb[0].mxu0
      %v1703 = vadd.f32 0.0, %v1702
      %v1704 = vpop.f32.mrb[0].mxu0
      %v1705 = vadd.f32 0.0, %v1704
      %1706 = vmatprep.mubr.f32.mxu0 0.0
      %1707 = vmatmul.mubr.f32.gmra.mrb[0].mxu0 %v1304
      %v1708 = vpop.f32.mrb[0].mxu0
      %v1709 = vadd.f32 0.0, %v1708
      %v1710 = vpop.f32.mrb[0].mxu0
      %v1711 = vadd.f32 0.0, %v1710
      %1712 = vmatprep.mubr.f32.mxu0 0.0
      %1713 = vmatmul.mubr.f32.gmra.mrb[0].mxu0 %v1307
      %v1714 = vpop.f32.mrb[0].mxu0
      %v1715 = vadd.f32 0.0, %v1714
      %v1716 = vpop.f32.mrb[0].mxu0
      %v1717 = vadd.f32 0.0, %v1716
      %1718 = vmatprep.mubr.f32.mxu0 0.0
      %1719 = vmatmul.mubr.f32.gmra.mrb[0].mxu0 %v1310
      %v1720 = vpop.f32.mrb[0].mxu0
      %v1721 = vadd.f32 0.0, %v1720
      %v1722 = vpop.f32.mrb[0].mxu0
      %v1723 = vadd.f32 0.0, %v1722
      %1724 = vmatprep.mubr.f32.mxu0 0.0
      %1725 = vmatmul.mubr.f32.gmra.mrb[0].mxu0 %v1313
      %v1726 = vpop.f32.mrb[0].mxu0
      %v1727 = vadd.f32 0.0, %v1726
      %v1728 = vpop.f32.mrb[0].mxu0
      %v1729 = vadd.f32 0.0, %v1728
      %1730 = vmatprep.mubr.f32.mxu0 0.0
      %1731 = vmatmul.mubr.f32.gmra.mrb[0].mxu0 %v1316
      %v1732 = vpop.f32.mrb[0].mxu0
      %v1733 = vadd.f32 0.0, %v1732
      %v1734 = vpop.f32.mrb[0].mxu0
      %v1735 = vadd.f32 0.0, %v1734
      %1736 = vmatprep.mubr.f32.mxu0 0.0
      %1737 = vmatmul.mubr.f32.gmra.mrb[0].mxu0 %v1319
      %v1738 = vpop.f32.mrb[0].mxu0
      %v1739 = vadd.f32 0.0, %v1738
      %v1740 = vpop.f32.mrb[0].mxu0
      %v1741 = vadd.f32 0.0, %v1740
      %1742 = vmatprep.mubr.f32.mxu0 0.0
      %1743 = vmatmul.mubr.f32.gmra.mrb[0].mxu0 %v1322
      %v1744 = vpop.f32.mrb[0].mxu0
      %v1745 = vadd.f32 0.0, %v1744
      %v1746 = vpop.f32.mrb[0].mxu0
      %v1747 = vadd.f32 0.0, %v1746
      %1748 = vmatprep.mubr.f32.mxu0 0.0
      %1749 = vmatmul.mubr.f32.gmra.mrb[0].mxu0 %v1325
      %v1750 = vpop.f32.mrb[0].mxu0
      %v1751 = vadd.f32 0.0, %v1750
      %v1752 = vpop.f32.mrb[0].mxu0
      %v1753 = vadd.f32 0.0, %v1752
      %1754 = vmatprep.mubr.f32.mxu0 0.0
      %1755 = vmatmul.mubr.f32.gmra.mrb[0].mxu0 %v1328
      %v1756 = vpop.f32.mrb[0].mxu0
      %v1757 = vadd.f32 0.0, %v1756
      %v1758 = vpop.f32.mrb[0].mxu0
      %v1759 = vadd.f32 0.0, %v1758
      %1760 = vmatprep.mubr.f32.mxu0 0.0
      %1761 = vmatmul.mubr.f32.gmra.mrb[0].mxu0 %v1331
      %v1762 = vpop.f32.mrb[0].mxu0
      %v1763 = vadd.f32 0.0, %v1762
      %v1764 = vpop.f32.mrb[0].mxu0
      %v1765 = vadd.f32 0.0, %v1764
      %1766 = vmatprep.mubr.f32.mxu0 0.0
      %1767 = vmatmul.mubr.f32.gmra.mrb[0].mxu0 %v1334
      %v1768 = vpop.f32.mrb[0].mxu0
      %v1769 = vadd.f32 0.0, %v1768
      %v1770 = vpop.f32.mrb[0].mxu0
      %v1771 = vadd.f32 0.0, %v1770
      %1772 = vmatprep.mubr.f32.mxu0 0.0
      %1773 = vmatmul.mubr.f32.gmra.mrb[0].mxu0 %v1337
      %v1774 = vpop.f32.mrb[0].mxu0
      %v1775 = vadd.f32 0.0, %v1774
      %v1776 = vpop.f32.mrb[0].mxu0
      %v1777 = vadd.f32 0.0, %v1776
      %1778 = vmatprep.mubr.f32.mxu0 0.0
      %1779 = vmatmul.mubr.f32.gmra.mrb[0].mxu0 %v1340
      %v1780 = vpop.f32.mrb[0].mxu0
      %v1781 = vadd.f32 0.0, %v1780
      %v1782 = vpop.f32.mrb[0].mxu0
      %v1783 = vadd.f32 0.0, %v1782
      %1784 = vmatprep.mubr.f32.mxu0 0.0
      %1785 = vmatmul.mubr.f32.gmra.mrb[0].mxu0 %v1343
      %v1786 = vpop.f32.mrb[0].mxu0
      %v1787 = vadd.f32 0.0, %v1786
      %v1788 = vpop.f32.mrb[0].mxu0
      %v1789 = vadd.f32 0.0, %v1788
      %1790 = vmatprep.mubr.f32.mxu0 0.0
      %1791 = vmatmul.mubr.f32.gmra.mrb[0].mxu0 %v1346
      %v1792 = vpop.f32.mrb[0].mxu0
      %v1793 = vadd.f32 0.0, %v1792
      %v1794 = vpop.f32.mrb[0].mxu0
      %v1795 = vadd.f32 0.0, %v1794
      %1796 = vdwg.mxu0
      %v1798 = vsel %vm1155, %v611, 0
      %v1801 = vsel %vm1155, %v612, 0
      %v1804 = vsel %vm1155, %v613, 0
      %v1807 = vsel %vm1155, %v614, 0
      %v1810 = vsel %vm1155, %v615, 0
      %v1813 = vsel %vm1155, %v616, 0
      %v1816 = vsel %vm1155, %v617, 0
      %v1819 = vsel %vm1155, %v618, 0
      %v1822 = vsel %vm1155, %v619, 0
      %v1825 = vsel %vm1155, %v620, 0
      %v1828 = vsel %vm1155, %v621, 0
      %v1831 = vsel %vm1155, %v622, 0
      %v1834 = vsel %vm1155, %v623, 0
      %v1837 = vsel %vm1155, %v624, 0
      %v1840 = vsel %vm1155, %v625, 0
      %v1843 = vsel %vm1155, %v626, 0
      %v1846 = vsel %vm1155, %v627, 0
      %v1849 = vsel %vm1155, %v628, 0
      %v1852 = vsel %vm1155, %v629, 0
      %v1855 = vsel %vm1155, %v630, 0
      %v1858 = vsel %vm1155, %v631, 0
      %v1861 = vsel %vm1155, %v632, 0
      %v1864 = vsel %vm1155, %v633, 0
      %v1867 = vsel %vm1155, %v634, 0
      %v1870 = vsel %vm1155, %v635, 0
      %v1873 = vsel %vm1155, %v636, 0
      %v1876 = vsel %vm1155, %v637, 0
      %v1879 = vsel %vm1155, %v638, 0
      %v1882 = vsel %vm1155, %v639, 0
      %v1885 = vsel %vm1155, %v640, 0
      %v1888 = vsel %vm1155, %v641, 0
      %v1891 = vsel %vm1155, %v642, 0
      %v1894 = vsel %vm1155, %v643, 0
      %v1897 = vsel %vm1155, %v644, 0
      %v1900 = vsel %vm1155, %v645, 0
      %v1903 = vsel %vm1155, %v646, 0
      %v1906 = vsel %vm1155, %v647, 0
      %v1909 = vsel %vm1155, %v648, 0
      %v1912 = vsel %vm1155, %v649, 0
      %v1915 = vsel %vm1155, %v650, 0
      %v1918 = vsel %vm1155, %v651, 0
      %v1921 = vsel %vm1155, %v652, 0
      %v1924 = vsel %vm1155, %v653, 0
      %v1927 = vsel %vm1155, %v654, 0
      %v1930 = vsel %vm1155, %v655, 0
      %v1933 = vsel %vm1155, %v656, 0
      %v1936 = vsel %vm1155, %v657, 0
      %v1939 = vsel %vm1155, %v658, 0
      %v1942 = vsel %vm1155, %v659, 0
      %v1945 = vsel %vm1155, %v660, 0
      %v1948 = vsel %vm1155, %v661, 0
      %v1951 = vsel %vm1155, %v662, 0
      %v1954 = vsel %vm1155, %v663, 0
      %v1957 = vsel %vm1155, %v664, 0
      %v1960 = vsel %vm1155, %v665, 0
      %v1963 = vsel %vm1155, %v666, 0
      %v1966 = vsel %vm1155, %v667, 0
      %v1969 = vsel %vm1155, %v668, 0
      %v1972 = vsel %vm1155, %v669, 0
      %v1975 = vsel %vm1155, %v670, 0
      %v1978 = vsel %vm1155, %v671, 0
      %v1981 = vsel %vm1155, %v672, 0
      %v1984 = vsel %vm1155, %v673, 0
      %v1987 = vsel %vm1155, %v674, 0
      %1989 = vmatprep.subr.mxu0 %v1124
      %1990 = vmatpush1.msra.mxu0 %v1123
      %1991 = vmatprep.subr.mxu0 %v1126
      %1992 = vmatpush1.msra.mxu0 %v1125
      %1993 = vmatprep.subr.mxu0 %v1128
      %1994 = vmatpush1.msra.mxu0 %v1127
      %1995 = vmatprep.subr.mxu0 %v1130
      %1996 = vmatpush1.msra.mxu0 %v1129
      %1997 = vmatprep.subr.mxu0 %v1132
      %1998 = vmatpush1.msra.mxu0 %v1131
      %1999 = vmatprep.subr.mxu0 %v1134
      %2000 = vmatpush1.msra.mxu0 %v1133
      %2001 = vmatprep.subr.mxu0 %v1136
      %2002 = vmatpush1.msra.mxu0 %v1135
      %2003 = vmatprep.subr.mxu0 %v1138
      %2004 = vmatpush1.msra.mxu0 %v1137
      %2005 = vmatprep.subr.mxu0 0.0
      %2006 = vmatpush1.msra.mxu0 0.0
      %2007 = vmatprep.subr.mxu0 0.0
      %2008 = vmatpush1.msra.mxu0 0.0
      %2009 = vmatprep.subr.mxu0 0.0
      %2010 = vmatpush1.msra.mxu0 0.0
      %2011 = vmatprep.subr.mxu0 0.0
      %2012 = vmatpush1.msra.mxu0 0.0
      %2013 = vmatprep.subr.mxu0 0.0
      %2014 = vmatpush1.msra.mxu0 0.0
      %2015 = vmatprep.subr.mxu0 0.0
      %2016 = vmatpush1.msra.mxu0 0.0
      %2017 = vmatprep.subr.mxu0 0.0
      %2018 = vmatpush1.msra.mxu0 0.0
      %2019 = vmatprep.subr.mxu0 0.0
      %2020 = vmatpush1.msra.mxu0 0.0
      %2021 = vmatprep.subr.mxu0 0.0
      %2022 = vmatpush1.msra.mxu0 0.0
      %2023 = vmatprep.subr.mxu0 0.0
      %2024 = vmatpush1.msra.mxu0 0.0
      %2025 = vmatprep.subr.mxu0 0.0
      %2026 = vmatpush1.msra.mxu0 0.0
      %2027 = vmatprep.subr.mxu0 0.0
      %2028 = vmatpush1.msra.mxu0 0.0
      %2029 = vmatprep.subr.mxu0 0.0
      %2030 = vmatpush1.msra.mxu0 0.0
      %2031 = vmatprep.subr.mxu0 0.0
      %2032 = vmatpush1.msra.mxu0 0.0
      %2033 = vmatprep.subr.mxu0 0.0
      %2034 = vmatpush1.msra.mxu0 0.0
      %2035 = vmatprep.subr.mxu0 0.0
      %2036 = vmatpush1.msra.mxu0 0.0
      %2037 = vmatprep.subr.mxu0 0.0
      %2038 = vmatpush1.msra.mxu0 0.0
      %2039 = vmatprep.subr.mxu0 0.0
      %2040 = vmatpush1.msra.mxu0 0.0
      %2041 = vmatprep.subr.mxu0 0.0
      %2042 = vmatpush1.msra.mxu0 0.0
      %2043 = vmatprep.subr.mxu0 0.0
      %2044 = vmatpush1.msra.mxu0 0.0
      %2045 = vmatprep.subr.mxu0 0.0
      %2046 = vmatpush1.msra.mxu0 0.0
      %2047 = vmatprep.subr.mxu0 0.0
      %2048 = vmatpush1.msra.mxu0 0.0
      %2049 = vmatprep.subr.mxu0 0.0
      %2050 = vmatpush1.msra.mxu0 0.0
      %2051 = vmatprep.subr.mxu0 0.0
      %2052 = vmatpush1.msra.mxu0 0.0
      %2053 = vmatprep.mubr.f32.mxu0 0.0
      %2054 = vmatmul.mubr.f32.gmra.mrb[0].mxu0 %v1798
      %v2055 = vpop.f32.mrb[0].mxu0
      %v2056 = vadd.f32 %v1415, %v2055
      %v2057 = vpop.f32.mrb[0].mxu0
      %v2058 = vadd.f32 %v1417, %v2057
      %2059 = vmatprep.mubr.f32.mxu0 0.0
      %2060 = vmatmul.mubr.f32.gmra.mrb[0].mxu0 %v1801
      %v2061 = vpop.f32.mrb[0].mxu0
      %v2062 = vadd.f32 %v1421, %v2061
      %v2063 = vpop.f32.mrb[0].mxu0
      %v2064 = vadd.f32 %v1423, %v2063
      %2065 = vmatprep.mubr.f32.mxu0 0.0
      %2066 = vmatmul.mubr.f32.gmra.mrb[0].mxu0 %v1804
      %v2067 = vpop.f32.mrb[0].mxu0
      %v2068 = vadd.f32 %v1427, %v2067
      %v2069 = vpop.f32.mrb[0].mxu0
      %v2070 = vadd.f32 %v1429, %v2069
      %2071 = vmatprep.mubr.f32.mxu0 0.0
      %2072 = vmatmul.mubr.f32.gmra.mrb[0].mxu0 %v1807
      %v2073 = vpop.f32.mrb[0].mxu0
      %v2074 = vadd.f32 %v1433, %v2073
      %v2075 = vpop.f32.mrb[0].mxu0
      %v2076 = vadd.f32 %v1435, %v2075
      %2077 = vmatprep.mubr.f32.mxu0 0.0
      %2078 = vmatmul.mubr.f32.gmra.mrb[0].mxu0 %v1810
      %v2079 = vpop.f32.mrb[0].mxu0
      %v2080 = vadd.f32 %v1439, %v2079
      %v2081 = vpop.f32.mrb[0].mxu0
      %v2082 = vadd.f32 %v1441, %v2081
      %2083 = vmatprep.mubr.f32.mxu0 0.0
      %2084 = vmatmul.mubr.f32.gmra.mrb[0].mxu0 %v1813
      %v2085 = vpop.f32.mrb[0].mxu0
      %v2086 = vadd.f32 %v1445, %v2085
      %v2087 = vpop.f32.mrb[0].mxu0
      %v2088 = vadd.f32 %v1447, %v2087
      %2089 = vmatprep.mubr.f32.mxu0 0.0
      %2090 = vmatmul.mubr.f32.gmra.mrb[0].mxu0 %v1816
      %v2091 = vpop.f32.mrb[0].mxu0
      %v2092 = vadd.f32 %v1451, %v2091
      %v2093 = vpop.f32.mrb[0].mxu0
      %v2094 = vadd.f32 %v1453, %v2093
      %2095 = vmatprep.mubr.f32.mxu0 0.0
      %2096 = vmatmul.mubr.f32.gmra.mrb[0].mxu0 %v1819
      %v2097 = vpop.f32.mrb[0].mxu0
      %v2098 = vadd.f32 %v1457, %v2097
      %v2099 = vpop.f32.mrb[0].mxu0
      %v2100 = vadd.f32 %v1459, %v2099
      %2101 = vmatprep.mubr.f32.mxu0 0.0
      %2102 = vmatmul.mubr.f32.gmra.mrb[0].mxu0 %v1822
      %v2103 = vpop.f32.mrb[0].mxu0
      %v2104 = vadd.f32 %v1463, %v2103
      %v2105 = vpop.f32.mrb[0].mxu0
      %v2106 = vadd.f32 %v1465, %v2105
      %2107 = vmatprep.mubr.f32.mxu0 0.0
      %2108 = vmatmul.mubr.f32.gmra.mrb[0].mxu0 %v1825
      %v2109 = vpop.f32.mrb[0].mxu0
      %v2110 = vadd.f32 %v1469, %v2109
      %v2111 = vpop.f32.mrb[0].mxu0
      %v2112 = vadd.f32 %v1471, %v2111
      %2113 = vmatprep.mubr.f32.mxu0 0.0
      %2114 = vmatmul.mubr.f32.gmra.mrb[0].mxu0 %v1828
      %v2115 = vpop.f32.mrb[0].mxu0
      %v2116 = vadd.f32 %v1475, %v2115
      %v2117 = vpop.f32.mrb[0].mxu0
      %v2118 = vadd.f32 %v1477, %v2117
      %2119 = vmatprep.mubr.f32.mxu0 0.0
      %2120 = vmatmul.mubr.f32.gmra.mrb[0].mxu0 %v1831
      %v2121 = vpop.f32.mrb[0].mxu0
      %v2122 = vadd.f32 %v1481, %v2121
      %v2123 = vpop.f32.mrb[0].mxu0
      %v2124 = vadd.f32 %v1483, %v2123
      %2125 = vmatprep.mubr.f32.mxu0 0.0
      %2126 = vmatmul.mubr.f32.gmra.mrb[0].mxu0 %v1834
      %v2127 = vpop.f32.mrb[0].mxu0
      %v2128 = vadd.f32 %v1487, %v2127
      %v2129 = vpop.f32.mrb[0].mxu0
      %v2130 = vadd.f32 %v1489, %v2129
      %2131 = vmatprep.mubr.f32.mxu0 0.0
      %2132 = vmatmul.mubr.f32.gmra.mrb[0].mxu0 %v1837
      %v2133 = vpop.f32.mrb[0].mxu0
      %v2134 = vadd.f32 %v1493, %v2133
      %v2135 = vpop.f32.mrb[0].mxu0
      %v2136 = vadd.f32 %v1495, %v2135
      %2137 = vmatprep.mubr.f32.mxu0 0.0
      %2138 = vmatmul.mubr.f32.gmra.mrb[0].mxu0 %v1840
      %v2139 = vpop.f32.mrb[0].mxu0
      %v2140 = vadd.f32 %v1499, %v2139
      %v2141 = vpop.f32.mrb[0].mxu0
      %v2142 = vadd.f32 %v1501, %v2141
      %2143 = vmatprep.mubr.f32.mxu0 0.0
      %2144 = vmatmul.mubr.f32.gmra.mrb[0].mxu0 %v1843
      %v2145 = vpop.f32.mrb[0].mxu0
      %v2146 = vadd.f32 %v1505, %v2145
      %v2147 = vpop.f32.mrb[0].mxu0
      %v2148 = vadd.f32 %v1507, %v2147
      %2149 = vmatprep.mubr.f32.mxu0 0.0
      %2150 = vmatmul.mubr.f32.gmra.mrb[0].mxu0 %v1846
      %v2151 = vpop.f32.mrb[0].mxu0
      %v2152 = vadd.f32 %v1511, %v2151
      %v2153 = vpop.f32.mrb[0].mxu0
      %v2154 = vadd.f32 %v1513, %v2153
      %2155 = vmatprep.mubr.f32.mxu0 0.0
      %2156 = vmatmul.mubr.f32.gmra.mrb[0].mxu0 %v1849
      %v2157 = vpop.f32.mrb[0].mxu0
      %v2158 = vadd.f32 %v1517, %v2157
      %v2159 = vpop.f32.mrb[0].mxu0
      %v2160 = vadd.f32 %v1519, %v2159
      %2161 = vmatprep.mubr.f32.mxu0 0.0
      %2162 = vmatmul.mubr.f32.gmra.mrb[0].mxu0 %v1852
      %v2163 = vpop.f32.mrb[0].mxu0
      %v2164 = vadd.f32 %v1523, %v2163
      %v2165 = vpop.f32.mrb[0].mxu0
      %v2166 = vadd.f32 %v1525, %v2165
      %2167 = vmatprep.mubr.f32.mxu0 0.0
      %2168 = vmatmul.mubr.f32.gmra.mrb[0].mxu0 %v1855
      %v2169 = vpop.f32.mrb[0].mxu0
      %v2170 = vadd.f32 %v1529, %v2169
      %v2171 = vpop.f32.mrb[0].mxu0
      %v2172 = vadd.f32 %v1531, %v2171
      %2173 = vmatprep.mubr.f32.mxu0 0.0
      %2174 = vmatmul.mubr.f32.gmra.mrb[0].mxu0 %v1858
      %v2175 = vpop.f32.mrb[0].mxu0
      %v2176 = vadd.f32 %v1535, %v2175
      %v2177 = vpop.f32.mrb[0].mxu0
      %v2178 = vadd.f32 %v1537, %v2177
      %2179 = vmatprep.mubr.f32.mxu0 0.0
      %2180 = vmatmul.mubr.f32.gmra.mrb[0].mxu0 %v1861
      %v2181 = vpop.f32.mrb[0].mxu0
      %v2182 = vadd.f32 %v1541, %v2181
      %v2183 = vpop.f32.mrb[0].mxu0
      %v2184 = vadd.f32 %v1543, %v2183
      %2185 = vmatprep.mubr.f32.mxu0 0.0
      %2186 = vmatmul.mubr.f32.gmra.mrb[0].mxu0 %v1864
      %v2187 = vpop.f32.mrb[0].mxu0
      %v2188 = vadd.f32 %v1547, %v2187
      %v2189 = vpop.f32.mrb[0].mxu0
      %v2190 = vadd.f32 %v1549, %v2189
      %2191 = vmatprep.mubr.f32.mxu0 0.0
      %2192 = vmatmul.mubr.f32.gmra.mrb[0].mxu0 %v1867
      %v2193 = vpop.f32.mrb[0].mxu0
      %v2194 = vadd.f32 %v1553, %v2193
      %v2195 = vpop.f32.mrb[0].mxu0
      %v2196 = vadd.f32 %v1555, %v2195
      %2197 = vmatprep.mubr.f32.mxu0 0.0
      %2198 = vmatmul.mubr.f32.gmra.mrb[0].mxu0 %v1870
      %v2199 = vpop.f32.mrb[0].mxu0
      %v2200 = vadd.f32 %v1559, %v2199
      %v2201 = vpop.f32.mrb[0].mxu0
      %v2202 = vadd.f32 %v1561, %v2201
      %2203 = vmatprep.mubr.f32.mxu0 0.0
      %2204 = vmatmul.mubr.f32.gmra.mrb[0].mxu0 %v1873
      %v2205 = vpop.f32.mrb[0].mxu0
      %v2206 = vadd.f32 %v1565, %v2205
      %v2207 = vpop.f32.mrb[0].mxu0
      %v2208 = vadd.f32 %v1567, %v2207
      %2209 = vmatprep.mubr.f32.mxu0 0.0
      %2210 = vmatmul.mubr.f32.gmra.mrb[0].mxu0 %v1876
      %v2211 = vpop.f32.mrb[0].mxu0
      %v2212 = vadd.f32 %v1571, %v2211
      %v2213 = vpop.f32.mrb[0].mxu0
      %v2214 = vadd.f32 %v1573, %v2213
      %2215 = vmatprep.mubr.f32.mxu0 0.0
      %2216 = vmatmul.mubr.f32.gmra.mrb[0].mxu0 %v1879
      %v2217 = vpop.f32.mrb[0].mxu0
      %v2218 = vadd.f32 %v1577, %v2217
      %v2219 = vpop.f32.mrb[0].mxu0
      %v2220 = vadd.f32 %v1579, %v2219
      %2221 = vmatprep.mubr.f32.mxu0 0.0
      %2222 = vmatmul.mubr.f32.gmra.mrb[0].mxu0 %v1882
      %v2223 = vpop.f32.mrb[0].mxu0
      %v2224 = vadd.f32 %v1583, %v2223
      %v2225 = vpop.f32.mrb[0].mxu0
      %v2226 = vadd.f32 %v1585, %v2225
      %2227 = vmatprep.mubr.f32.mxu0 0.0
      %2228 = vmatmul.mubr.f32.gmra.mrb[0].mxu0 %v1885
      %v2229 = vpop.f32.mrb[0].mxu0
      %v2230 = vadd.f32 %v1589, %v2229
      %v2231 = vpop.f32.mrb[0].mxu0
      %v2232 = vadd.f32 %v1591, %v2231
      %2233 = vmatprep.mubr.f32.mxu0 0.0
      %2234 = vmatmul.mubr.f32.gmra.mrb[0].mxu0 %v1888
      %v2235 = vpop.f32.mrb[0].mxu0
      %v2236 = vadd.f32 %v1595, %v2235
      %v2237 = vpop.f32.mrb[0].mxu0
      %v2238 = vadd.f32 %v1597, %v2237
      %2239 = vmatprep.mubr.f32.mxu0 0.0
      %2240 = vmatmul.mubr.f32.gmra.mrb[0].mxu0 %v1891
      %v2241 = vpop.f32.mrb[0].mxu0
      %v2242 = vadd.f32 %v1601, %v2241
      %v2243 = vpop.f32.mrb[0].mxu0
      %v2244 = vadd.f32 %v1603, %v2243
      %2245 = vmatprep.mubr.f32.mxu0 0.0
      %2246 = vmatmul.mubr.f32.gmra.mrb[0].mxu0 %v1894
      %v2247 = vpop.f32.mrb[0].mxu0
      %v2248 = vadd.f32 %v1607, %v2247
      %v2249 = vpop.f32.mrb[0].mxu0
      %v2250 = vadd.f32 %v1609, %v2249
      %2251 = vmatprep.mubr.f32.mxu0 0.0
      %2252 = vmatmul.mubr.f32.gmra.mrb[0].mxu0 %v1897
      %v2253 = vpop.f32.mrb[0].mxu0
      %v2254 = vadd.f32 %v1613, %v2253
      %v2255 = vpop.f32.mrb[0].mxu0
      %v2256 = vadd.f32 %v1615, %v2255
      %2257 = vmatprep.mubr.f32.mxu0 0.0
      %2258 = vmatmul.mubr.f32.gmra.mrb[0].mxu0 %v1900
      %v2259 = vpop.f32.mrb[0].mxu0
      %v2260 = vadd.f32 %v1619, %v2259
      %v2261 = vpop.f32.mrb[0].mxu0
      %v2262 = vadd.f32 %v1621, %v2261
      %2263 = vmatprep.mubr.f32.mxu0 0.0
      %2264 = vmatmul.mubr.f32.gmra.mrb[0].mxu0 %v1903
      %v2265 = vpop.f32.mrb[0].mxu0
      %v2266 = vadd.f32 %v1625, %v2265
      %v2267 = vpop.f32.mrb[0].mxu0
      %v2268 = vadd.f32 %v1627, %v2267
      %2269 = vmatprep.mubr.f32.mxu0 0.0
      %2270 = vmatmul.mubr.f32.gmra.mrb[0].mxu0 %v1906
      %v2271 = vpop.f32.mrb[0].mxu0
      %v2272 = vadd.f32 %v1631, %v2271
      %v2273 = vpop.f32.mrb[0].mxu0
      %v2274 = vadd.f32 %v1633, %v2273
      %2275 = vmatprep.mubr.f32.mxu0 0.0
      %2276 = vmatmul.mubr.f32.gmra.mrb[0].mxu0 %v1909
      %v2277 = vpop.f32.mrb[0].mxu0
      %v2278 = vadd.f32 %v1637, %v2277
      %v2279 = vpop.f32.mrb[0].mxu0
      %v2280 = vadd.f32 %v1639, %v2279
      %2281 = vmatprep.mubr.f32.mxu0 0.0
      %2282 = vmatmul.mubr.f32.gmra.mrb[0].mxu0 %v1912
      %v2283 = vpop.f32.mrb[0].mxu0
      %v2284 = vadd.f32 %v1643, %v2283
      %v2285 = vpop.f32.mrb[0].mxu0
      %v2286 = vadd.f32 %v1645, %v2285
      %2287 = vmatprep.mubr.f32.mxu0 0.0
      %2288 = vmatmul.mubr.f32.gmra.mrb[0].mxu0 %v1915
      %v2289 = vpop.f32.mrb[0].mxu0
      %v2290 = vadd.f32 %v1649, %v2289
      %v2291 = vpop.f32.mrb[0].mxu0
      %v2292 = vadd.f32 %v1651, %v2291
      %2293 = vmatprep.mubr.f32.mxu0 0.0
      %2294 = vmatmul.mubr.f32.gmra.mrb[0].mxu0 %v1918
      %v2295 = vpop.f32.mrb[0].mxu0
      %v2296 = vadd.f32 %v1655, %v2295
      %v2297 = vpop.f32.mrb[0].mxu0
      %v2298 = vadd.f32 %v1657, %v2297
      %2299 = vmatprep.mubr.f32.mxu0 0.0
      %2300 = vmatmul.mubr.f32.gmra.mrb[0].mxu0 %v1921
      %v2301 = vpop.f32.mrb[0].mxu0
      %v2302 = vadd.f32 %v1661, %v2301
      %v2303 = vpop.f32.mrb[0].mxu0
      %v2304 = vadd.f32 %v1663, %v2303
      %2305 = vmatprep.mubr.f32.mxu0 0.0
      %2306 = vmatmul.mubr.f32.gmra.mrb[0].mxu0 %v1924
      %v2307 = vpop.f32.mrb[0].mxu0
      %v2308 = vadd.f32 %v1667, %v2307
      %v2309 = vpop.f32.mrb[0].mxu0
      %v2310 = vadd.f32 %v1669, %v2309
      %2311 = vmatprep.mubr.f32.mxu0 0.0
      %2312 = vmatmul.mubr.f32.gmra.mrb[0].mxu0 %v1927
      %v2313 = vpop.f32.mrb[0].mxu0
      %v2314 = vadd.f32 %v1673, %v2313
      %v2315 = vpop.f32.mrb[0].mxu0
      %v2316 = vadd.f32 %v1675, %v2315
      %2317 = vmatprep.mubr.f32.mxu0 0.0
      %2318 = vmatmul.mubr.f32.gmra.mrb[0].mxu0 %v1930
      %v2319 = vpop.f32.mrb[0].mxu0
      %v2320 = vadd.f32 %v1679, %v2319
      %v2321 = vpop.f32.mrb[0].mxu0
      %v2322 = vadd.f32 %v1681, %v2321
      %2323 = vmatprep.mubr.f32.mxu0 0.0
      %2324 = vmatmul.mubr.f32.gmra.mrb[0].mxu0 %v1933
      %v2325 = vpop.f32.mrb[0].mxu0
      %v2326 = vadd.f32 %v1685, %v2325
      %v2327 = vpop.f32.mrb[0].mxu0
      %v2328 = vadd.f32 %v1687, %v2327
      %2329 = vmatprep.mubr.f32.mxu0 0.0
      %2330 = vmatmul.mubr.f32.gmra.mrb[0].mxu0 %v1936
      %v2331 = vpop.f32.mrb[0].mxu0
      %v2332 = vadd.f32 %v1691, %v2331
      %v2333 = vpop.f32.mrb[0].mxu0
      %v2334 = vadd.f32 %v1693, %v2333
      %2335 = vmatprep.mubr.f32.mxu0 0.0
      %2336 = vmatmul.mubr.f32.gmra.mrb[0].mxu0 %v1939
      %v2337 = vpop.f32.mrb[0].mxu0
      %v2338 = vadd.f32 %v1697, %v2337
      %v2339 = vpop.f32.mrb[0].mxu0
      %v2340 = vadd.f32 %v1699, %v2339
      %2341 = vmatprep.mubr.f32.mxu0 0.0
      %2342 = vmatmul.mubr.f32.gmra.mrb[0].mxu0 %v1942
      %v2343 = vpop.f32.mrb[0].mxu0
      %v2344 = vadd.f32 %v1703, %v2343
      %v2345 = vpop.f32.mrb[0].mxu0
      %v2346 = vadd.f32 %v1705, %v2345
      %2347 = vmatprep.mubr.f32.mxu0 0.0
      %2348 = vmatmul.mubr.f32.gmra.mrb[0].mxu0 %v1945
      %v2349 = vpop.f32.mrb[0].mxu0
      %v2350 = vadd.f32 %v1709, %v2349
      %v2351 = vpop.f32.mrb[0].mxu0
      %v2352 = vadd.f32 %v1711, %v2351
      %2353 = vmatprep.mubr.f32.mxu0 0.0
      %2354 = vmatmul.mubr.f32.gmra.mrb[0].mxu0 %v1948
      %v2355 = vpop.f32.mrb[0].mxu0
      %v2356 = vadd.f32 %v1715, %v2355
      %v2357 = vpop.f32.mrb[0].mxu0
      %v2358 = vadd.f32 %v1717, %v2357
      %2359 = vmatprep.mubr.f32.mxu0 0.0
      %2360 = vmatmul.mubr.f32.gmra.mrb[0].mxu0 %v1951
      %v2361 = vpop.f32.mrb[0].mxu0
      %v2362 = vadd.f32 %v1721, %v2361
      %v2363 = vpop.f32.mrb[0].mxu0
      %v2364 = vadd.f32 %v1723, %v2363
      %2365 = vmatprep.mubr.f32.mxu0 0.0
      %2366 = vmatmul.mubr.f32.gmra.mrb[0].mxu0 %v1954
      %v2367 = vpop.f32.mrb[0].mxu0
      %v2368 = vadd.f32 %v1727, %v2367
      %v2369 = vpop.f32.mrb[0].mxu0
      %v2370 = vadd.f32 %v1729, %v2369
      %2371 = vmatprep.mubr.f32.mxu0 0.0
      %2372 = vmatmul.mubr.f32.gmra.mrb[0].mxu0 %v1957
      %v2373 = vpop.f32.mrb[0].mxu0
      %v2374 = vadd.f32 %v1733, %v2373
      %v2375 = vpop.f32.mrb[0].mxu0
      %v2376 = vadd.f32 %v1735, %v2375
      %2377 = vmatprep.mubr.f32.mxu0 0.0
      %2378 = vmatmul.mubr.f32.gmra.mrb[0].mxu0 %v1960
      %v2379 = vpop.f32.mrb[0].mxu0
      %v2380 = vadd.f32 %v1739, %v2379
      %v2381 = vpop.f32.mrb[0].mxu0
      %v2382 = vadd.f32 %v1741, %v2381
      %2383 = vmatprep.mubr.f32.mxu0 0.0
      %2384 = vmatmul.mubr.f32.gmra.mrb[0].mxu0 %v1963
      %v2385 = vpop.f32.mrb[0].mxu0
      %v2386 = vadd.f32 %v1745, %v2385
      %v2387 = vpop.f32.mrb[0].mxu0
      %v2388 = vadd.f32 %v1747, %v2387
      %2389 = vmatprep.mubr.f32.mxu0 0.0
      %2390 = vmatmul.mubr.f32.gmra.mrb[0].mxu0 %v1966
      %v2391 = vpop.f32.mrb[0].mxu0
      %v2392 = vadd.f32 %v1751, %v2391
      %v2393 = vpop.f32.mrb[0].mxu0
      %v2394 = vadd.f32 %v1753, %v2393
      %2395 = vmatprep.mubr.f32.mxu0 0.0
      %2396 = vmatmul.mubr.f32.gmra.mrb[0].mxu0 %v1969
      %v2397 = vpop.f32.mrb[0].mxu0
      %v2398 = vadd.f32 %v1757, %v2397
      %v2399 = vpop.f32.mrb[0].mxu0
      %v2400 = vadd.f32 %v1759, %v2399
      %2401 = vmatprep.mubr.f32.mxu0 0.0
      %2402 = vmatmul.mubr.f32.gmra.mrb[0].mxu0 %v1972
      %v2403 = vpop.f32.mrb[0].mxu0
      %v2404 = vadd.f32 %v1763, %v2403
      %v2405 = vpop.f32.mrb[0].mxu0
      %v2406 = vadd.f32 %v1765, %v2405
      %2407 = vmatprep.mubr.f32.mxu0 0.0
      %2408 = vmatmul.mubr.f32.gmra.mrb[0].mxu0 %v1975
      %v2409 = vpop.f32.mrb[0].mxu0
      %v2410 = vadd.f32 %v1769, %v2409
      %v2411 = vpop.f32.mrb[0].mxu0
      %v2412 = vadd.f32 %v1771, %v2411
      %2413 = vmatprep.mubr.f32.mxu0 0.0
      %2414 = vmatmul.mubr.f32.gmra.mrb[0].mxu0 %v1978
      %v2415 = vpop.f32.mrb[0].mxu0
      %v2416 = vadd.f32 %v1775, %v2415
      %v2417 = vpop.f32.mrb[0].mxu0
      %v2418 = vadd.f32 %v1777, %v2417
      %2419 = vmatprep.mubr.f32.mxu0 0.0
      %2420 = vmatmul.mubr.f32.gmra.mrb[0].mxu0 %v1981
      %v2421 = vpop.f32.mrb[0].mxu0
      %v2422 = vadd.f32 %v1781, %v2421
      %v2423 = vpop.f32.mrb[0].mxu0
      %v2424 = vadd.f32 %v1783, %v2423
      %2425 = vmatprep.mubr.f32.mxu0 0.0
      %2426 = vmatmul.mubr.f32.gmra.mrb[0].mxu0 %v1984
      %v2427 = vpop.f32.mrb[0].mxu0
      %v2428 = vadd.f32 %v1787, %v2427
      %v2429 = vpop.f32.mrb[0].mxu0
      %v2430 = vadd.f32 %v1789, %v2429
      %2431 = vmatprep.mubr.f32.mxu0 0.0
      %2432 = vmatmul.mubr.f32.gmra.mrb[0].mxu0 %v1987
      %v2433 = vpop.f32.mrb[0].mxu0
      %v2434 = vadd.f32 %v1793, %v2433
      %v2435 = vpop.f32.mrb[0].mxu0
      %v2436 = vadd.f32 %v1795, %v2435
      %2437 = vdwg.mxu0
      %v2438 = vmax.f32 %v2056, 0.0
      %v2439 = vmax.f32 %v2058, 0.0
      %v2440 = vmax.f32 %v2062, 0.0
      %v2441 = vmax.f32 %v2064, 0.0
      %v2442 = vmax.f32 %v2068, 0.0
      %v2443 = vmax.f32 %v2070, 0.0
      %v2444 = vmax.f32 %v2074, 0.0
      %v2445 = vmax.f32 %v2076, 0.0
      %v2446 = vmax.f32 %v2080, 0.0
      %v2447 = vmax.f32 %v2082, 0.0
      %v2448 = vmax.f32 %v2086, 0.0
      %v2449 = vmax.f32 %v2088, 0.0
      %v2450 = vmax.f32 %v2092, 0.0
      %v2451 = vmax.f32 %v2094, 0.0
      %v2452 = vmax.f32 %v2098, 0.0
      %v2453 = vmax.f32 %v2100, 0.0
      %v2454 = vmax.f32 %v2104, 0.0
      %v2455 = vmax.f32 %v2106, 0.0
      %v2456 = vmax.f32 %v2110, 0.0
      %v2457 = vmax.f32 %v2112, 0.0
      %v2458 = vmax.f32 %v2116, 0.0
      %v2459 = vmax.f32 %v2118, 0.0
      %v2460 = vmax.f32 %v2122, 0.0
      %v2461 = vmax.f32 %v2124, 0.0
      %v2462 = vmax.f32 %v2128, 0.0
      %v2463 = vmax.f32 %v2130, 0.0
      %v2464 = vmax.f32 %v2134, 0.0
      %v2465 = vmax.f32 %v2136, 0.0
      %v2466 = vmax.f32 %v2140, 0.0
      %v2467 = vmax.f32 %v2142, 0.0
      %v2468 = vmax.f32 %v2146, 0.0
      %v2469 = vmax.f32 %v2148, 0.0
      %v2470 = vmax.f32 %v2152, 0.0
      %v2471 = vmax.f32 %v2154, 0.0
      %v2472 = vmax.f32 %v2158, 0.0
      %v2473 = vmax.f32 %v2160, 0.0
      %v2474 = vmax.f32 %v2164, 0.0
      %v2475 = vmax.f32 %v2166, 0.0
      %v2476 = vmax.f32 %v2170, 0.0
      %v2477 = vmax.f32 %v2172, 0.0
      %v2478 = vmax.f32 %v2176, 0.0
      %v2479 = vmax.f32 %v2178, 0.0
      %v2480 = vmax.f32 %v2182, 0.0
      %v2481 = vmax.f32 %v2184, 0.0
      %v2482 = vmax.f32 %v2188, 0.0
      %v2483 = vmax.f32 %v2190, 0.0
      %v2484 = vmax.f32 %v2194, 0.0
      %v2485 = vmax.f32 %v2196, 0.0
      %v2486 = vmax.f32 %v2200, 0.0
      %v2487 = vmax.f32 %v2202, 0.0
      %v2488 = vmax.f32 %v2206, 0.0
      %v2489 = vmax.f32 %v2208, 0.0
      %v2490 = vmax.f32 %v2212, 0.0
      %v2491 = vmax.f32 %v2214, 0.0
      %v2492 = vmax.f32 %v2218, 0.0
      %v2493 = vmax.f32 %v2220, 0.0
      %v2494 = vmax.f32 %v2224, 0.0
      %v2495 = vmax.f32 %v2226, 0.0
      %v2496 = vmax.f32 %v2230, 0.0
      %v2497 = vmax.f32 %v2232, 0.0
      %v2498 = vmax.f32 %v2236, 0.0
      %v2499 = vmax.f32 %v2238, 0.0
      %v2500 = vmax.f32 %v2242, 0.0
      %v2501 = vmax.f32 %v2244, 0.0
      %v2502 = vmax.f32 %v2248, 0.0
      %v2503 = vmax.f32 %v2250, 0.0
      %v2504 = vmax.f32 %v2254, 0.0
      %v2505 = vmax.f32 %v2256, 0.0
      %v2506 = vmax.f32 %v2260, 0.0
      %v2507 = vmax.f32 %v2262, 0.0
      %v2508 = vmax.f32 %v2266, 0.0
      %v2509 = vmax.f32 %v2268, 0.0
      %v2510 = vmax.f32 %v2272, 0.0
      %v2511 = vmax.f32 %v2274, 0.0
      %v2512 = vmax.f32 %v2278, 0.0
      %v2513 = vmax.f32 %v2280, 0.0
      %v2514 = vmax.f32 %v2284, 0.0
      %v2515 = vmax.f32 %v2286, 0.0
      %v2516 = vmax.f32 %v2290, 0.0
      %v2517 = vmax.f32 %v2292, 0.0
      %v2518 = vmax.f32 %v2296, 0.0
      %v2519 = vmax.f32 %v2298, 0.0
      %v2520 = vmax.f32 %v2302, 0.0
      %v2521 = vmax.f32 %v2304, 0.0
      %v2522 = vmax.f32 %v2308, 0.0
      %v2523 = vmax.f32 %v2310, 0.0
      %v2524 = vmax.f32 %v2314, 0.0
      %v2525 = vmax.f32 %v2316, 0.0
      %v2526 = vmax.f32 %v2320, 0.0
      %v2527 = vmax.f32 %v2322, 0.0
      %v2528 = vmax.f32 %v2326, 0.0
      %v2529 = vmax.f32 %v2328, 0.0
      %v2530 = vmax.f32 %v2332, 0.0
      %v2531 = vmax.f32 %v2334, 0.0
      %v2532 = vmax.f32 %v2338, 0.0
      %v2533 = vmax.f32 %v2340, 0.0
      %v2534 = vmax.f32 %v2344, 0.0
      %v2535 = vmax.f32 %v2346, 0.0
      %v2536 = vmax.f32 %v2350, 0.0
      %v2537 = vmax.f32 %v2352, 0.0
      %v2538 = vmax.f32 %v2356, 0.0
      %v2539 = vmax.f32 %v2358, 0.0
      %v2540 = vmax.f32 %v2362, 0.0
      %v2541 = vmax.f32 %v2364, 0.0
      %v2542 = vmax.f32 %v2368, 0.0
      %v2543 = vmax.f32 %v2370, 0.0
      %v2544 = vmax.f32 %v2374, 0.0
      %v2545 = vmax.f32 %v2376, 0.0
      %v2546 = vmax.f32 %v2380, 0.0
      %v2547 = vmax.f32 %v2382, 0.0
      %v2548 = vmax.f32 %v2386, 0.0
      %v2549 = vmax.f32 %v2388, 0.0
      %v2550 = vmax.f32 %v2392, 0.0
      %v2551 = vmax.f32 %v2394, 0.0
      %v2552 = vmax.f32 %v2398, 0.0
      %v2553 = vmax.f32 %v2400, 0.0
      %v2554 = vmax.f32 %v2404, 0.0
      %v2555 = vmax.f32 %v2406, 0.0
      %v2556 = vmax.f32 %v2410, 0.0
      %v2557 = vmax.f32 %v2412, 0.0
      %v2558 = vmax.f32 %v2416, 0.0
      %v2559 = vmax.f32 %v2418, 0.0
      %v2560 = vmax.f32 %v2422, 0.0
      %v2561 = vmax.f32 %v2424, 0.0
      %v2562 = vmax.f32 %v2428, 0.0
      %v2563 = vmax.f32 %v2430, 0.0
      %v2564 = vmax.f32 %v2434, 0.0
      %v2565 = vmax.f32 %v2436, 0.0
      %2566 = vst [vmem:[%s223] sm:$0xff] %v2438
      %vm2567 = vcmask 891904
      %2568 = vst.msk [vmem:[%s223 + $0x8] sm:$0xff] %vm2567, %v2439
      %2569 = vst [vmem:[%s223 + $0x10] sm:$0xff] %v2440
      %2570 = vst.msk [vmem:[%s223 + $0x18] sm:$0xff] %vm2567, %v2441
      %2571 = vst [vmem:[%s223 + $0x20] sm:$0xff] %v2442
      %2572 = vst.msk [vmem:[%s223 + $0x28] sm:$0xff] %vm2567, %v2443
      %2573 = vst [vmem:[%s223 + $0x30] sm:$0xff] %v2444
      %2574 = vst.msk [vmem:[%s223 + $0x38] sm:$0xff] %vm2567, %v2445
      %2575 = vst [vmem:[%s223 + $0x40] sm:$0xff] %v2446
      %2576 = vst.msk [vmem:[%s223 + $0x48] sm:$0xff] %vm2567, %v2447
      %2577 = vst [vmem:[%s223 + $0x50] sm:$0xff] %v2448
      %2578 = vst.msk [vmem:[%s223 + $0x58] sm:$0xff] %vm2567, %v2449
      %2579 = vst [vmem:[%s223 + $0x60] sm:$0xff] %v2450
      %2580 = vst.msk [vmem:[%s223 + $0x68] sm:$0xff] %vm2567, %v2451
      %2581 = vst [vmem:[%s223 + $0x70] sm:$0xff] %v2452
      %2582 = vst.msk [vmem:[%s223 + $0x78] sm:$0xff] %vm2567, %v2453
      %2583 = vst [vmem:[%s223 + $0x80] sm:$0xff] %v2454
      %2584 = vst.msk [vmem:[%s223 + $0x88] sm:$0xff] %vm2567, %v2455
      %2585 = vst [vmem:[%s223 + $0x90] sm:$0xff] %v2456
      %2586 = vst.msk [vmem:[%s223 + $0x98] sm:$0xff] %vm2567, %v2457
      %2587 = vst [vmem:[%s223 + $0xa0] sm:$0xff] %v2458
      %2588 = vst.msk [vmem:[%s223 + $0xa8] sm:$0xff] %vm2567, %v2459
      %2589 = vst [vmem:[%s223 + $0xb0] sm:$0xff] %v2460
      %2590 = vst.msk [vmem:[%s223 + $0xb8] sm:$0xff] %vm2567, %v2461
      %2591 = vst [vmem:[%s223 + $0xc0] sm:$0xff] %v2462
      %2592 = vst.msk [vmem:[%s223 + $0xc8] sm:$0xff] %vm2567, %v2463
      %2593 = vst [vmem:[%s223 + $0xd0] sm:$0xff] %v2464
      %2594 = vst.msk [vmem:[%s223 + $0xd8] sm:$0xff] %vm2567, %v2465
      %2595 = vst [vmem:[%s223 + $0xe0] sm:$0xff] %v2466
      %2596 = vst.msk [vmem:[%s223 + $0xe8] sm:$0xff] %vm2567, %v2467
      %2597 = vst [vmem:[%s223 + $0xf0] sm:$0xff] %v2468
      %2598 = vst.msk [vmem:[%s223 + $0xf8] sm:$0xff] %vm2567, %v2469
      %2599 = vst [vmem:[%s223 + $0x100] sm:$0xff] %v2470
      %2600 = vst.msk [vmem:[%s223 + $0x108] sm:$0xff] %vm2567, %v2471
      %2601 = vst [vmem:[%s223 + $0x110] sm:$0xff] %v2472
      %2602 = vst.msk [vmem:[%s223 + $0x118] sm:$0xff] %vm2567, %v2473
      %2603 = vst [vmem:[%s223 + $0x120] sm:$0xff] %v2474
      %2604 = vst.msk [vmem:[%s223 + $0x128] sm:$0xff] %vm2567, %v2475
      %2605 = vst [vmem:[%s223 + $0x130] sm:$0xff] %v2476
      %2606 = vst.msk [vmem:[%s223 + $0x138] sm:$0xff] %vm2567, %v2477
      %2607 = vst [vmem:[%s223 + $0x140] sm:$0xff] %v2478
      %2608 = vst.msk [vmem:[%s223 + $0x148] sm:$0xff] %vm2567, %v2479
      %2609 = vst [vmem:[%s223 + $0x150] sm:$0xff] %v2480
      %2610 = vst.msk [vmem:[%s223 + $0x158] sm:$0xff] %vm2567, %v2481
      %2611 = vst [vmem:[%s223 + $0x160] sm:$0xff] %v2482
      %2612 = vst.msk [vmem:[%s223 + $0x168] sm:$0xff] %vm2567, %v2483
      %2613 = vst [vmem:[%s223 + $0x170] sm:$0xff] %v2484
      %2614 = vst.msk [vmem:[%s223 + $0x178] sm:$0xff] %vm2567, %v2485
      %2615 = vst [vmem:[%s223 + $0x180] sm:$0xff] %v2486
      %2616 = vst.msk [vmem:[%s223 + $0x188] sm:$0xff] %vm2567, %v2487
      %2617 = vst [vmem:[%s223 + $0x190] sm:$0xff] %v2488
      %2618 = vst.msk [vmem:[%s223 + $0x198] sm:$0xff] %vm2567, %v2489
      %2619 = vst [vmem:[%s223 + $0x1a0] sm:$0xff] %v2490
      %2620 = vst.msk [vmem:[%s223 + $0x1a8] sm:$0xff] %vm2567, %v2491
      %2621 = vst [vmem:[%s223 + $0x1b0] sm:$0xff] %v2492
      %2622 = vst.msk [vmem:[%s223 + $0x1b8] sm:$0xff] %vm2567, %v2493
      %2623 = vst [vmem:[%s223 + $0x1c0] sm:$0xff] %v2494
      %2624 = vst.msk [vmem:[%s223 + $0x1c8] sm:$0xff] %vm2567, %v2495
      %2625 = vst [vmem:[%s223 + $0x1d0] sm:$0xff] %v2496
      %2626 = vst.msk [vmem:[%s223 + $0x1d8] sm:$0xff] %vm2567, %v2497
      %2627 = vst [vmem:[%s223 + $0x1e0] sm:$0xff] %v2498
      %2628 = vst.msk [vmem:[%s223 + $0x1e8] sm:$0xff] %vm2567, %v2499
      %2629 = vst [vmem:[%s223 + $0x1f0] sm:$0xff] %v2500
      %2630 = vst.msk [vmem:[%s223 + $0x1f8] sm:$0xff] %vm2567, %v2501
      %2631 = vst [vmem:[%s223 + $0x200] sm:$0xff] %v2502
      %2632 = vst.msk [vmem:[%s223 + $0x208] sm:$0xff] %vm2567, %v2503
      %2633 = vst [vmem:[%s223 + $0x210] sm:$0xff] %v2504
      %2634 = vst.msk [vmem:[%s223 + $0x218] sm:$0xff] %vm2567, %v2505
      %2635 = vst [vmem:[%s223 + $0x220] sm:$0xff] %v2506
      %2636 = vst.msk [vmem:[%s223 + $0x228] sm:$0xff] %vm2567, %v2507
      %2637 = vst [vmem:[%s223 + $0x230] sm:$0xff] %v2508
      %2638 = vst.msk [vmem:[%s223 + $0x238] sm:$0xff] %vm2567, %v2509
      %2639 = vst [vmem:[%s223 + $0x240] sm:$0xff] %v2510
      %2640 = vst.msk [vmem:[%s223 + $0x248] sm:$0xff] %vm2567, %v2511
      %2641 = vst [vmem:[%s223 + $0x250] sm:$0xff] %v2512
      %2642 = vst.msk [vmem:[%s223 + $0x258] sm:$0xff] %vm2567, %v2513
      %2643 = vst [vmem:[%s223 + $0x260] sm:$0xff] %v2514
      %2644 = vst.msk [vmem:[%s223 + $0x268] sm:$0xff] %vm2567, %v2515
      %2645 = vst [vmem:[%s223 + $0x270] sm:$0xff] %v2516
      %2646 = vst.msk [vmem:[%s223 + $0x278] sm:$0xff] %vm2567, %v2517
      %2647 = vst [vmem:[%s223 + $0x280] sm:$0xff] %v2518
      %2648 = vst.msk [vmem:[%s223 + $0x288] sm:$0xff] %vm2567, %v2519
      %2649 = vst [vmem:[%s223 + $0x290] sm:$0xff] %v2520
      %2650 = vst.msk [vmem:[%s223 + $0x298] sm:$0xff] %vm2567, %v2521
      %2651 = vst [vmem:[%s223 + $0x2a0] sm:$0xff] %v2522
      %2652 = vst.msk [vmem:[%s223 + $0x2a8] sm:$0xff] %vm2567, %v2523
      %2653 = vst [vmem:[%s223 + $0x2b0] sm:$0xff] %v2524
      %2654 = vst.msk [vmem:[%s223 + $0x2b8] sm:$0xff] %vm2567, %v2525
      %2655 = vst [vmem:[%s223 + $0x2c0] sm:$0xff] %v2526
      %2656 = vst.msk [vmem:[%s223 + $0x2c8] sm:$0xff] %vm2567, %v2527
      %2657 = vst [vmem:[%s223 + $0x2d0] sm:$0xff] %v2528
      %2658 = vst.msk [vmem:[%s223 + $0x2d8] sm:$0xff] %vm2567, %v2529
      %2659 = vst [vmem:[%s223 + $0x2e0] sm:$0xff] %v2530
      %2660 = vst.msk [vmem:[%s223 + $0x2e8] sm:$0xff] %vm2567, %v2531
      %2661 = vst [vmem:[%s223 + $0x2f0] sm:$0xff] %v2532
      %2662 = vst.msk [vmem:[%s223 + $0x2f8] sm:$0xff] %vm2567, %v2533
      %2663 = vst [vmem:[%s223 + $0x300] sm:$0xff] %v2534
      %2664 = vst.msk [vmem:[%s223 + $0x308] sm:$0xff] %vm2567, %v2535
      %2665 = vst [vmem:[%s223 + $0x310] sm:$0xff] %v2536
      %2666 = vst.msk [vmem:[%s223 + $0x318] sm:$0xff] %vm2567, %v2537
      %2667 = vst [vmem:[%s223 + $0x320] sm:$0xff] %v2538
      %2668 = vst.msk [vmem:[%s223 + $0x328] sm:$0xff] %vm2567, %v2539
      %2669 = vst [vmem:[%s223 + $0x330] sm:$0xff] %v2540
      %2670 = vst.msk [vmem:[%s223 + $0x338] sm:$0xff] %vm2567, %v2541
      %2671 = vst [vmem:[%s223 + $0x340] sm:$0xff] %v2542
      %2672 = vst.msk [vmem:[%s223 + $0x348] sm:$0xff] %vm2567, %v2543
      %2673 = vst [vmem:[%s223 + $0x350] sm:$0xff] %v2544
      %2674 = vst.msk [vmem:[%s223 + $0x358] sm:$0xff] %vm2567, %v2545
      %2675 = vst [vmem:[%s223 + $0x360] sm:$0xff] %v2546
      %2676 = vst.msk [vmem:[%s223 + $0x368] sm:$0xff] %vm2567, %v2547
      %2677 = vst [vmem:[%s223 + $0x370] sm:$0xff] %v2548
      %2678 = vst.msk [vmem:[%s223 + $0x378] sm:$0xff] %vm2567, %v2549
      %2679 = vst [vmem:[%s223 + $0x380] sm:$0xff] %v2550
      %2680 = vst.msk [vmem:[%s223 + $0x388] sm:$0xff] %vm2567, %v2551
      %2681 = vst [vmem:[%s223 + $0x390] sm:$0xff] %v2552
      %2682 = vst.msk [vmem:[%s223 + $0x398] sm:$0xff] %vm2567, %v2553
      %2683 = vst [vmem:[%s223 + $0x3a0] sm:$0xff] %v2554
      %2684 = vst.msk [vmem:[%s223 + $0x3a8] sm:$0xff] %vm2567, %v2555
      %2685 = vst [vmem:[%s223 + $0x3b0] sm:$0xff] %v2556
      %2686 = vst.msk [vmem:[%s223 + $0x3b8] sm:$0xff] %vm2567, %v2557
      %2687 = vst [vmem:[%s223 + $0x3c0] sm:$0xff] %v2558
      %2688 = vst.msk [vmem:[%s223 + $0x3c8] sm:$0xff] %vm2567, %v2559
      %2689 = vst [vmem:[%s223 + $0x3d0] sm:$0xff] %v2560
      %2690 = vst.msk [vmem:[%s223 + $0x3d8] sm:$0xff] %vm2567, %v2561
      %2691 = vst [vmem:[%s223 + $0x3e0] sm:$0xff] %v2562
      %2692 = vst.msk [vmem:[%s223 + $0x3e8] sm:$0xff] %vm2567, %v2563
      %2693 = vst [vmem:[%s223 + $0x3f0] sm:$0xff] %v2564
      %2694 = vst.msk [vmem:[%s223 + $0x3f8] sm:$0xff] %vm2567, %v2565
      %s2695 = smul.u32 64, %s15
      %p2696 = scmp.lt.s32.totalorder %s2695, 255
      %s2697 = scalar_select %p2696, %s2695, 255
      %s2698 = smul.addr %s2697, 2
      %s2699 = smul.addr %s2698, 8
      %s2700 = scalar_lea.vmem %s4, %s2699
      // Predicated region
      $region37: #{rel_link_predictor.1} parent=35 // pred_check
        %p2701 = pneg %p127
      $region38: #{rel_link_predictor.1} parent=35 // pred_check_branch
        %2703 = sbr.rel (%p2701) target = $region40
      $region39: #{rel_link_predictor.1} parent=35 // pred_region
        %s2704 = smul.u32 64, %s15
      $region40: #{rel_link_predictor.1} parent=35 // pred_fallthru
        _
    $region36: #{rel_link_predictor.1} parent=5 // pred_fallthru
      _
    %p2705 = scmp.le.s32.totalorder 2, %s10
    // Predicated region
    $region41: #{rel_link_predictor.1} parent=5 // pred_check
      %p2706 = pneg %p2705
    $region42: #{rel_link_predictor.1} parent=5 // pred_check_branch
      %2708 = sbr.rel (%p2706) target = $region44
    $region43: #{rel_link_predictor.1} parent=5 // pred_region
      %s2709 = ssub.s32 %s10, 2
      // Predicated region
      $region45: #{rel_link_predictor.1} parent=43 // pred_check
        %p2710 = pneg %p133
      $region46: #{rel_link_predictor.1} parent=43 // pred_check_branch
        %2712 = sbr.rel (%p2710) target = $region48
      $region47: #{rel_link_predictor.1} parent=43 // pred_region
        %s2713 = smul.u32 64, %s16
        %p2714 = scmp.lt.s32.totalorder %s2713, 255
        %s2715 = scalar_select %p2714, %s2713, 255
        %s2716 = smul.addr %s2715, 2
        %s2717 = smul.addr %s2716, 8
        %s2718 = scalar_lea.vmem %s4, %s2717
      $region48: #{rel_link_predictor.1} parent=43 // pred_fallthru
        _
    $region44: #{rel_link_predictor.1} parent=5 // pred_fallthru
      _
  $region6: #{rel_link_predictor.1} parent=0 // loop_footer
    %s14 = sadd.s32 1, %s10
  $region7: #{rel_link_predictor.1} parent=0 // loop_footer_branch
    %9 = sbr.rel target = $region3
  $region8: #{rel_link_predictor.1} parent=0 // loop_exit
    _

</llo_original>
